<compile_context>
chip_gen: v5e
topology: v5e:2x2
jax: 0.10.0
libtpu: 0.0.40
codegen_flags: <defaults>
</compile_context>

<pallas_src>
import functools

import jax
import jax.numpy as jnp
from jax import lax
from jax.experimental import pallas as pl
from jax.experimental.pallas import tpu as pltpu


def _round_up(x, m):
    return (x + m - 1) // m * m


def inverted_residual_kernel(x_ref, w1_ref, dw_ref, b2_ref, w3_ref, b3_ref,
                             mask_ref, o_ref, *, taps, lane_out, cin,
                             identity, compute_dtype):
    """One batch element per grid step; fully fused in VMEM.

    x_ref    : (1, Cin+1, Lin) input, channels in sublanes, flattened spatial
                               (128-padded) in lanes; last row is ones (folded
                               expand bias).  stride 2: four polyphase slabs,
                               each padded to `lane_out` lanes, concatenated.
    w1_ref   : (Chid, Cin+1)   expand 1x1 weights | b1 column (compute_dtype)
    dw_ref   : (Chid, 9)       depthwise 3x3 taps, t = di*3 + dj        (f32)
    b2_ref   : (Chid, 1)
    w3_ref   : (Cout, Chid)    project 1x1 weights (compute_dtype)
    b3_ref   : (Cout, 1)
    mask_ref : (9, lane_out)   1.0 where tap t reads a valid image position
    o_ref    : (1, Cout, lane_out)
    taps     : static tuple of (phase, shift) per tap; phase is None for the
               stride-1 path (single full-width slab).
    """
    cd = compute_dtype
    x = x_ref[0]                                            # (Cin+1, Lin) f32

    # --- 1) expand 1x1 (+ folded bias): one whole-slab MXU matmul + ReLU6 ---
    h1 = jnp.dot(w1_ref[...], x.astype(cd),
                 preferred_element_type=jnp.float32)
    h1 = jnp.clip(h1, 0.0, 6.0)                             # (Chid, Lin) f32

    # --- 2) depthwise 3x3: 9 lane rolls (XLU) + per-tap MXU scale + VPU FMA -
    acc = None
    for t, (phase, shift) in enumerate(taps):               # short fixed unroll
        if phase is None:
            src = h1
        else:                                               # 128-aligned slice
            src = h1[:, phase * lane_out:(phase + 1) * lane_out]
        if shift != 0:
            # shifted[p] = src[p + shift]; wrapped entries are masked to zero.
            src = pltpu.roll(src, shift=(-shift) % lane_out, axis=1)
        # Combined per-tap scale = outer(dw[:, t], mask[t]) on the (otherwise
        # idle) MXU -> only 2 VPU ops/elem remain in this loop (mul + add).
        wm = jnp.dot(dw_ref[:, t:t + 1], mask_ref[t:t + 1, :],
                     preferred_element_type=jnp.float32)    # (Chid, lane_out)
        term = src * wm
        acc = term if acc is None else acc + term
    h2 = jnp.clip(acc + b2_ref[...], 0.0, 6.0)              # (Chid, lane_out)

    # --- 3) project 1x1: MXU matmul; (Cout, lane_out) output is lane-dense ---
    y = jnp.dot(w3_ref[...], h2.astype(cd),
                preferred_element_type=jnp.float32) + b3_ref[...]
    if identity:
        y = y + x[:cin, :]                                  # residual, f32
    o_ref[0] = y.astype(o_ref.dtype)                        # single dense store


def inverted_residual_pallas(x_nchw, w1_oihw, b1, dw_oihw, b2, w3_oihw, b3,
                             *, stride, compute_dtype=jnp.bfloat16,
                             vmem_limit_bytes=None):
    """Wrapper: PyTorch NCHW input / OIHW weights in, NCHW out.

    `compute_dtype` (default bf16, valid on v5e/v6e/v7x — every MXU is
    bf16-native) only affects the two 1x1-conv matmul operands; accumulation
    and all depthwise / bias / ReLU6 math stay f32.
    """
    N, Cin, H, W = x_nchw.shape
    Chid = w1_oihw.shape[0]
    Cout = w3_oihw.shape[0]
    identity = (stride == 1) and (Cin == Cout)

    Ho = (H + 2 - 3) // stride + 1
    Wo = (W + 2 - 3) // stride + 1
    f32 = jnp.float32

    # ---- parameters in channels-in-sublanes layout (pre-cast once) ---------
    w1 = jnp.concatenate([w1_oihw[:, :, 0, 0], b1[:, None]], axis=1)
    w1 = w1.astype(compute_dtype)                         # (Chid, Cin+1)
    dw = dw_oihw[:, 0, :, :].reshape(Chid, 9).astype(f32) # (Chid, 9), t=di*3+dj
    w3 = w3_oihw[:, :, 0, 0].astype(compute_dtype)        # (Cout, Chid)
    b2c = b2.reshape(Chid, 1).astype(f32)
    b3c = b3.reshape(Cout, 1).astype(f32)

    # ---- input layout, per-tap offsets and boundary masks ------------------
    if stride == 1:
        HW = H * W
        Lout = _round_up(HW, 128)            # lane-dense (>=128, unmasked vst)
        Lin = Lout
        x_in = x_nchw.reshape(N, Cin, HW).astype(f32)
        x_in = jnp.pad(x_in, ((0, 0), (0, 0), (0, Lin - HW)))
        taps = tuple((None, (t // 3 - 1) * W + (t % 3 - 1)) for t in range(9))
        p = jnp.arange(Lout, dtype=jnp.int32)
        oi, oj = p // W, p % W
        lane_ok = p < HW
        masks = []
        for t in range(9):
            di, dj = t // 3, t % 3
            ii, jj = oi + di - 1, oj + dj - 1
            masks.append((lane_ok & (ii >= 0) & (ii < H) &
                          (jj >= 0) & (jj < W)).astype(f32))
        masks = jnp.stack(masks, axis=0)                   # (9, Lout)
    else:
        # stride 2: polyphase split of x in the wrapper (cheap XLA slices on
        # the smallest tensor).  Each phase slab is exactly output-sized
        # (Hp, Wp) = (Ho, Wo), so the depthwise runs directly at output
        # resolution — no subsampling matrix, 4x less depthwise/project work.
        Hp, Wp = Ho, Wo                                    # = ceil(H/2), ceil(W/2)
        Lout = _round_up(Hp * Wp, 128)
        Lin = 4 * Lout
        xp = jnp.pad(x_nchw.astype(f32),
                     ((0, 0), (0, 0), (0, 2 * Hp - H), (0, 2 * Wp - W)))
        xp = xp.reshape(N, Cin, Hp, 2, Wp, 2).transpose(0, 1, 3, 5, 2, 4)
        xp = xp.reshape(N, Cin, 4, Hp * Wp)
        xp = jnp.pad(xp, ((0, 0), (0, 0), (0, 0), (0, Lout - Hp * Wp)))
        x_in = xp.reshape(N, Cin, Lin)
        taps = []
        for t in range(9):
            di, dj = t // 3, t % 3
            pi, pj = (di - 1) % 2, (dj - 1) % 2            # phase of tap
            qi, qj = (di - 1 - pi) // 2, (dj - 1 - pj) // 2  # in-phase offset
            taps.append((pi * 2 + pj, qi * Wp + qj))
        taps = tuple(taps)
        p = jnp.arange(Lout, dtype=jnp.int32)
        ho, wo = p // Wp, p % Wp
        lane_ok = p < Hp * Wp
        masks = []
        for t in range(9):
            di, dj = t // 3, t % 3
            ii, jj = 2 * ho + di - 1, 2 * wo + dj - 1
            masks.append((lane_ok & (ii >= 0) & (ii < H) &
                          (jj >= 0) & (jj < W)).astype(f32))
        masks = jnp.stack(masks, axis=0)                   # (9, Lout)

    # Ones row for the folded expand bias (extra input "channel").
    x_in = jnp.concatenate(
        [x_in, jnp.ones((N, 1, Lin), dtype=f32)], axis=1)  # (N, Cin+1, Lin)

    kernel = functools.partial(
        inverted_residual_kernel, taps=taps, lane_out=Lout, cin=Cin,
        identity=identity, compute_dtype=compute_dtype)

    in_specs = [
        pl.BlockSpec((1, Cin + 1, Lin), lambda n: (n, 0, 0)),
        # Grid-invariant operands below are small (the sel matrix is gone); at
        # production sizes they could be single-buffered via
        # pipeline_mode=pl.Buffered(1) to recover a little VMEM.
        pl.BlockSpec((Chid, Cin + 1), lambda n: (0, 0)),
        pl.BlockSpec((Chid, 9), lambda n: (0, 0)),
        pl.BlockSpec((Chid, 1), lambda n: (0, 0)),
        pl.BlockSpec((Cout, Chid), lambda n: (0, 0)),
        pl.BlockSpec((Cout, 1), lambda n: (0, 0)),
        pl.BlockSpec((9, Lout), lambda n: (0, 0)),
    ]

    compiler_kwargs = dict(dimension_semantics=("parallel",))
    if vmem_limit_bytes is not None:                       # production-size knob
        compiler_kwargs["vmem_limit_bytes"] = vmem_limit_bytes

    out = pl.pallas_call(
        kernel,
        out_shape=jax.ShapeDtypeStruct((N, Cout, Lout), x_nchw.dtype),
        grid_spec=pltpu.PrefetchScalarGridSpec(
            num_scalar_prefetch=0,
            grid=(N,),
            in_specs=in_specs,
            # Lane-dense output block (multiple of 128), already NCHW-flat.
            out_specs=pl.BlockSpec((1, Cout, Lout), lambda n: (n, 0, 0)),
        ),
        compiler_params=pltpu.CompilerParams(**compiler_kwargs),
    )(x_in, w1, dw, b2c, w3, b3c, masks)

    return out[:, :, :Ho * Wo].reshape(N, Cout, Ho, Wo)    # drop lane padding


def inverted_residual_reference(x, w1, b1, dw, b2, w3, b3, *, stride):
    """Pure-JAX reference (NCHW, OIHW) mirroring the PyTorch forward."""
    Cin = x.shape[1]
    Chid = w1.shape[0]
    Cout = w3.shape[0]
    dn = ("NCHW", "OIHW", "NCHW")
    y = lax.conv_general_dilated(x, w1, (1, 1), "VALID", dimension_numbers=dn)
    y = jnp.clip(y + b1[None, :, None, None], 0.0, 6.0)
    y = lax.conv_general_dilated(y, dw, (stride, stride), ((1, 1), (1, 1)),
                                 dimension_numbers=dn,
                                 feature_group_count=Chid)
    y = jnp.clip(y + b2[None, :, None, None], 0.0, 6.0)
    y = lax.conv_general_dilated(y, w3, (1, 1), "VALID", dimension_numbers=dn)
    y = y + b3[None, :, None, None]
    if stride == 1 and Cin == Cout:
        y = x + y
    return y


if __name__ == "__main__":
    EXPAND_RATIO = 4

    def make_inputs(seed, n, inp, oup, h, w):
        hidden = round(inp * EXPAND_RATIO)
        k = jax.random.split(jax.random.PRNGKey(seed), 7)
        x = jax.random.normal(k[0], (n, inp, h, w), dtype=jnp.float32)
        w1 = 0.1 * jax.random.normal(k[1], (hidden, inp, 1, 1), jnp.float32)
        b1 = 0.1 * jax.random.normal(k[2], (hidden,), jnp.float32)
        dw = 0.1 * jax.random.normal(k[3], (hidden, 1, 3, 3), jnp.float32)
        b2 = 0.1 * jax.random.normal(k[4], (hidden,), jnp.float32)
        w3 = 0.1 * jax.random.normal(k[5], (oup, hidden, 1, 1), jnp.float32)
        b3 = 0.1 * jax.random.normal(k[6], (oup,), jnp.float32)
        return x, w1, b1, dw, b2, w3, b3

    def check(args, stride, compute_dtype, rtol, atol):
        out = inverted_residual_pallas(*args, stride=stride,
                                       compute_dtype=compute_dtype)
        out = jax.block_until_ready(out)
        ref = jax.block_until_ready(
            inverted_residual_reference(*args, stride=stride))
        assert out.shape == ref.shape, (out.shape, ref.shape)
        err = float(jnp.max(jnp.abs(out - ref)))
        assert jnp.allclose(out, ref, rtol=rtol, atol=atol), err

    # 1) stride=1, inp==oup -> residual path (lanes already 128-aligned), f32.
    check(make_inputs(0, 2, 8, 8, 16, 16), 1, jnp.float32, 1e-4, 1e-4)
    # 2) stride=2, inp!=oup -> polyphase path, f32.
    check(make_inputs(1, 2, 8, 16, 16, 16), 2, jnp.float32, 1e-4, 1e-4)
    # 3) stride=1 with HW not a multiple of 128 -> lane padding + slicing.
    check(make_inputs(2, 2, 8, 8, 12, 12), 1, jnp.float32, 1e-4, 1e-4)
    # 4) stride=2 with odd spatial extent -> polyphase zero-pad + masks.
    check(make_inputs(3, 2, 8, 16, 15, 15), 2, jnp.float32, 1e-4, 1e-4)
    # 5) default bf16 matmul operands (valid on v5e/v6e/v7x), f32 accumulation.
    check(make_inputs(0, 2, 8, 8, 16, 16), 1, jnp.bfloat16, 5e-2, 5e-2)
    check(make_inputs(1, 2, 8, 16, 16, 16), 2, jnp.bfloat16, 5e-2, 5e-2)

    print("KERNEL_OK")
</pallas_src>

<mosaic_0001>
module attributes {stable_mosaic.version = 11 : i64} {
  func.func @inverted_residual_kernel(%arg0: i32, %arg1: memref<1x9x256xf32, #tpu.memory_space<vmem>>, %arg2: memref<32x9xf32, #tpu.memory_space<vmem>>, %arg3: memref<32x9xf32, #tpu.memory_space<vmem>>, %arg4: memref<32x1xf32, #tpu.memory_space<vmem>>, %arg5: memref<8x32xf32, #tpu.memory_space<vmem>>, %arg6: memref<8x1xf32, #tpu.memory_space<vmem>>, %arg7: memref<9x256xf32, #tpu.memory_space<vmem>>, %arg8: memref<1x8x256xf32, #tpu.memory_space<vmem>>) attributes {dimension_semantics = [#tpu.dimension_semantics<parallel>], iteration_bounds = array<i64: 2>, scalar_prefetch = 0 : i64, scratch_operands = 0 : i64, tpu.core_type = #tpu.core_type<tc>, window_params = [{transform_indices = @transform_0, window_bounds = array<i64: 1, 9, 256>}, {pipeline_mode = #tpu.pipeline_mode<synchronous>, transform_indices = @transform_1, window_bounds = array<i64: 32, 9>}, {pipeline_mode = #tpu.pipeline_mode<synchronous>, transform_indices = @transform_2, window_bounds = array<i64: 32, 9>}, {pipeline_mode = #tpu.pipeline_mode<synchronous>, transform_indices = @transform_3, window_bounds = array<i64: 32, 1>}, {pipeline_mode = #tpu.pipeline_mode<synchronous>, transform_indices = @transform_4, window_bounds = array<i64: 8, 32>}, {pipeline_mode = #tpu.pipeline_mode<synchronous>, transform_indices = @transform_5, window_bounds = array<i64: 8, 1>}, {pipeline_mode = #tpu.pipeline_mode<synchronous>, transform_indices = @transform_6, window_bounds = array<i64: 9, 256>}, {transform_indices = @transform_7, window_bounds = array<i64: 1, 8, 256>}]} {
    %c0 = arith.constant 0 : index
    %c0_0 = arith.constant 0 : index
    %c0_1 = arith.constant 0 : index
    %0 = vector.load %arg1[%c0, %c0_0, %c0_1] : memref<1x9x256xf32, #tpu.memory_space<vmem>>, vector<1x9x256xf32>
    %1 = vector.shape_cast %0 : vector<1x9x256xf32> to vector<9x256xf32>
    %c0_2 = arith.constant 0 : index
    %c0_3 = arith.constant 0 : index
    %2 = vector.load %arg2[%c0_2, %c0_3] : memref<32x9xf32, #tpu.memory_space<vmem>>, vector<32x9xf32>
    %cst = arith.constant dense<0.000000e+00> : vector<32x256xf32>
    %3 = tpu.matmul %2, %1, %cst {dimension_numbers = #tpu.dot_dimension_numbers<[1], [0], [0], [1], [0, 0, 1, 1], [], []>} : vector<32x9xf32>, vector<9x256xf32>, vector<32x256xf32> -> vector<32x256xf32>
    %cst_4 = arith.constant 0.000000e+00 : f32
    %cst_5 = arith.constant 6.000000e+00 : f32
    %4 = vector.broadcast %cst_4 : f32 to vector<32x256xf32>
    %5 = arith.maximumf %4, %3 : vector<32x256xf32>
    %6 = vector.broadcast %cst_5 : f32 to vector<32x256xf32>
    %7 = arith.minimumf %6, %5 : vector<32x256xf32>
    %c17_i32 = arith.constant 17 : i32
    %8 = tpu.dynamic_rotate %7 by %c17_i32 dim 1 : vector<32x256xf32>, i32 -> vector<32x256xf32>
    %c0_6 = arith.constant 0 : index
    %c0_7 = arith.constant 0 : index
    %9 = vector.load %arg3[%c0_6, %c0_7] : memref<32x9xf32, #tpu.memory_space<vmem>>, vector<32x1xf32>
    %c0_8 = arith.constant 0 : index
    %c0_9 = arith.constant 0 : index
    %10 = vector.load %arg7[%c0_8, %c0_9] : memref<9x256xf32, #tpu.memory_space<vmem>>, vector<1x256xf32>
    %cst_10 = arith.constant dense<0.000000e+00> : vector<32x256xf32>
    %11 = tpu.matmul %9, %10, %cst_10 {dimension_numbers = #tpu.dot_dimension_numbers<[1], [0], [0], [1], [0, 0, 1, 1], [], []>} : vector<32x1xf32>, vector<1x256xf32>, vector<32x256xf32> -> vector<32x256xf32>
    %12 = arith.mulf %8, %11 : vector<32x256xf32>
    %c16_i32 = arith.constant 16 : i32
    %13 = tpu.dynamic_rotate %7 by %c16_i32 dim 1 : vector<32x256xf32>, i32 -> vector<32x256xf32>
    %c0_11 = arith.constant 0 : index
    %c1 = arith.constant 1 : index
    %14 = vector.load %arg3[%c0_11, %c1] : memref<32x9xf32, #tpu.memory_space<vmem>>, vector<32x1xf32>
    %c1_12 = arith.constant 1 : index
    %c0_13 = arith.constant 0 : index
    %15 = vector.load %arg7[%c1_12, %c0_13] : memref<9x256xf32, #tpu.memory_space<vmem>>, vector<1x256xf32>
    %cst_14 = arith.constant dense<0.000000e+00> : vector<32x256xf32>
    %16 = tpu.matmul %14, %15, %cst_14 {dimension_numbers = #tpu.dot_dimension_numbers<[1], [0], [0], [1], [0, 0, 1, 1], [], []>} : vector<32x1xf32>, vector<1x256xf32>, vector<32x256xf32> -> vector<32x256xf32>
    %17 = arith.mulf %13, %16 : vector<32x256xf32>
    %18 = arith.addf %12, %17 : vector<32x256xf32>
    %c15_i32 = arith.constant 15 : i32
    %19 = tpu.dynamic_rotate %7 by %c15_i32 dim 1 : vector<32x256xf32>, i32 -> vector<32x256xf32>
    %c0_15 = arith.constant 0 : index
    %c2 = arith.constant 2 : index
    %20 = vector.load %arg3[%c0_15, %c2] : memref<32x9xf32, #tpu.memory_space<vmem>>, vector<32x1xf32>
    %c2_16 = arith.constant 2 : index
    %c0_17 = arith.constant 0 : index
    %21 = vector.load %arg7[%c2_16, %c0_17] : memref<9x256xf32, #tpu.memory_space<vmem>>, vector<1x256xf32>
    %cst_18 = arith.constant dense<0.000000e+00> : vector<32x256xf32>
    %22 = tpu.matmul %20, %21, %cst_18 {dimension_numbers = #tpu.dot_dimension_numbers<[1], [0], [0], [1], [0, 0, 1, 1], [], []>} : vector<32x1xf32>, vector<1x256xf32>, vector<32x256xf32> -> vector<32x256xf32>
    %23 = arith.mulf %19, %22 : vector<32x256xf32>
    %24 = arith.addf %18, %23 : vector<32x256xf32>
    %c1_i32 = arith.constant 1 : i32
    %25 = tpu.dynamic_rotate %7 by %c1_i32 dim 1 : vector<32x256xf32>, i32 -> vector<32x256xf32>
    %c0_19 = arith.constant 0 : index
    %c3 = arith.constant 3 : index
    %26 = vector.load %arg3[%c0_19, %c3] : memref<32x9xf32, #tpu.memory_space<vmem>>, vector<32x1xf32>
    %c3_20 = arith.constant 3 : index
    %c0_21 = arith.constant 0 : index
    %27 = vector.load %arg7[%c3_20, %c0_21] : memref<9x256xf32, #tpu.memory_space<vmem>>, vector<1x256xf32>
    %cst_22 = arith.constant dense<0.000000e+00> : vector<32x256xf32>
    %28 = tpu.matmul %26, %27, %cst_22 {dimension_numbers = #tpu.dot_dimension_numbers<[1], [0], [0], [1], [0, 0, 1, 1], [], []>} : vector<32x1xf32>, vector<1x256xf32>, vector<32x256xf32> -> vector<32x256xf32>
    %29 = arith.mulf %25, %28 : vector<32x256xf32>
    %30 = arith.addf %24, %29 : vector<32x256xf32>
    %c0_23 = arith.constant 0 : index
    %c4 = arith.constant 4 : index
    %31 = vector.load %arg3[%c0_23, %c4] : memref<32x9xf32, #tpu.memory_space<vmem>>, vector<32x1xf32>
    %c4_24 = arith.constant 4 : index
    %c0_25 = arith.constant 0 : index
    %32 = vector.load %arg7[%c4_24, %c0_25] : memref<9x256xf32, #tpu.memory_space<vmem>>, vector<1x256xf32>
    %cst_26 = arith.constant dense<0.000000e+00> : vector<32x256xf32>
    %33 = tpu.matmul %31, %32, %cst_26 {dimension_numbers = #tpu.dot_dimension_numbers<[1], [0], [0], [1], [0, 0, 1, 1], [], []>} : vector<32x1xf32>, vector<1x256xf32>, vector<32x256xf32> -> vector<32x256xf32>
    %34 = arith.mulf %7, %33 : vector<32x256xf32>
    %35 = arith.addf %30, %34 : vector<32x256xf32>
    %c255_i32 = arith.constant 255 : i32
    %36 = tpu.dynamic_rotate %7 by %c255_i32 dim 1 : vector<32x256xf32>, i32 -> vector<32x256xf32>
    %c0_27 = arith.constant 0 : index
    %c5 = arith.constant 5 : index
    %37 = vector.load %arg3[%c0_27, %c5] : memref<32x9xf32, #tpu.memory_space<vmem>>, vector<32x1xf32>
    %c5_28 = arith.constant 5 : index
    %c0_29 = arith.constant 0 : index
    %38 = vector.load %arg7[%c5_28, %c0_29] : memref<9x256xf32, #tpu.memory_space<vmem>>, vector<1x256xf32>
    %cst_30 = arith.constant dense<0.000000e+00> : vector<32x256xf32>
    %39 = tpu.matmul %37, %38, %cst_30 {dimension_numbers = #tpu.dot_dimension_numbers<[1], [0], [0], [1], [0, 0, 1, 1], [], []>} : vector<32x1xf32>, vector<1x256xf32>, vector<32x256xf32> -> vector<32x256xf32>
    %40 = arith.mulf %36, %39 : vector<32x256xf32>
    %41 = arith.addf %35, %40 : vector<32x256xf32>
    %c241_i32 = arith.constant 241 : i32
    %42 = tpu.dynamic_rotate %7 by %c241_i32 dim 1 : vector<32x256xf32>, i32 -> vector<32x256xf32>
    %c0_31 = arith.constant 0 : index
    %c6 = arith.constant 6 : index
    %43 = vector.load %arg3[%c0_31, %c6] : memref<32x9xf32, #tpu.memory_space<vmem>>, vector<32x1xf32>
    %c6_32 = arith.constant 6 : index
    %c0_33 = arith.constant 0 : index
    %44 = vector.load %arg7[%c6_32, %c0_33] : memref<9x256xf32, #tpu.memory_space<vmem>>, vector<1x256xf32>
    %cst_34 = arith.constant dense<0.000000e+00> : vector<32x256xf32>
    %45 = tpu.matmul %43, %44, %cst_34 {dimension_numbers = #tpu.dot_dimension_numbers<[1], [0], [0], [1], [0, 0, 1, 1], [], []>} : vector<32x1xf32>, vector<1x256xf32>, vector<32x256xf32> -> vector<32x256xf32>
    %46 = arith.mulf %42, %45 : vector<32x256xf32>
    %47 = arith.addf %41, %46 : vector<32x256xf32>
    %c240_i32 = arith.constant 240 : i32
    %48 = tpu.dynamic_rotate %7 by %c240_i32 dim 1 : vector<32x256xf32>, i32 -> vector<32x256xf32>
    %c0_35 = arith.constant 0 : index
    %c7 = arith.constant 7 : index
    %49 = vector.load %arg3[%c0_35, %c7] : memref<32x9xf32, #tpu.memory_space<vmem>>, vector<32x1xf32>
    %c7_36 = arith.constant 7 : index
    %c0_37 = arith.constant 0 : index
    %50 = vector.load %arg7[%c7_36, %c0_37] : memref<9x256xf32, #tpu.memory_space<vmem>>, vector<1x256xf32>
    %cst_38 = arith.constant dense<0.000000e+00> : vector<32x256xf32>
    %51 = tpu.matmul %49, %50, %cst_38 {dimension_numbers = #tpu.dot_dimension_numbers<[1], [0], [0], [1], [0, 0, 1, 1], [], []>} : vector<32x1xf32>, vector<1x256xf32>, vector<32x256xf32> -> vector<32x256xf32>
    %52 = arith.mulf %48, %51 : vector<32x256xf32>
    %53 = arith.addf %47, %52 : vector<32x256xf32>
    %c239_i32 = arith.constant 239 : i32
    %54 = tpu.dynamic_rotate %7 by %c239_i32 dim 1 : vector<32x256xf32>, i32 -> vector<32x256xf32>
    %c0_39 = arith.constant 0 : index
    %c8 = arith.constant 8 : index
    %55 = vector.load %arg3[%c0_39, %c8] : memref<32x9xf32, #tpu.memory_space<vmem>>, vector<32x1xf32>
    %c8_40 = arith.constant 8 : index
    %c0_41 = arith.constant 0 : index
    %56 = vector.load %arg7[%c8_40, %c0_41] : memref<9x256xf32, #tpu.memory_space<vmem>>, vector<1x256xf32>
    %cst_42 = arith.constant dense<0.000000e+00> : vector<32x256xf32>
    %57 = tpu.matmul %55, %56, %cst_42 {dimension_numbers = #tpu.dot_dimension_numbers<[1], [0], [0], [1], [0, 0, 1, 1], [], []>} : vector<32x1xf32>, vector<1x256xf32>, vector<32x256xf32> -> vector<32x256xf32>
    %58 = arith.mulf %54, %57 : vector<32x256xf32>
    %59 = arith.addf %53, %58 : vector<32x256xf32>
    %c0_43 = arith.constant 0 : index
    %c0_44 = arith.constant 0 : index
    %60 = vector.load %arg4[%c0_43, %c0_44] : memref<32x1xf32, #tpu.memory_space<vmem>>, vector<32x1xf32>
    %61 = vector.broadcast %60 : vector<32x1xf32> to vector<32x256xf32>
    %62 = arith.addf %59, %61 : vector<32x256xf32>
    %cst_45 = arith.constant 0.000000e+00 : f32
    %cst_46 = arith.constant 6.000000e+00 : f32
    %63 = vector.broadcast %cst_45 : f32 to vector<32x256xf32>
    %64 = arith.maximumf %63, %62 : vector<32x256xf32>
    %65 = vector.broadcast %cst_46 : f32 to vector<32x256xf32>
    %66 = arith.minimumf %65, %64 : vector<32x256xf32>
    %c0_47 = arith.constant 0 : index
    %c0_48 = arith.constant 0 : index
    %67 = vector.load %arg5[%c0_47, %c0_48] : memref<8x32xf32, #tpu.memory_space<vmem>>, vector<8x32xf32>
    %cst_49 = arith.constant dense<0.000000e+00> : vector<8x256xf32>
    %68 = tpu.matmul %67, %66, %cst_49 {dimension_numbers = #tpu.dot_dimension_numbers<[1], [0], [0], [1], [0, 0, 1, 1], [], []>} : vector<8x32xf32>, vector<32x256xf32>, vector<8x256xf32> -> vector<8x256xf32>
    %c0_50 = arith.constant 0 : index
    %c0_51 = arith.constant 0 : index
    %69 = vector.load %arg6[%c0_50, %c0_51] : memref<8x1xf32, #tpu.memory_space<vmem>>, vector<8x1xf32>
    %70 = vector.broadcast %69 : vector<8x1xf32> to vector<8x256xf32>
    %71 = arith.addf %68, %70 : vector<8x256xf32>
    %72 = vector.extract_strided_slice %1 {offsets = [0, 0], sizes = [8, 256], strides = [1, 1]} : vector<9x256xf32> to vector<8x256xf32>
    %73 = arith.addf %71, %72 : vector<8x256xf32>
    %c0_52 = arith.constant 0 : index
    %c0_53 = arith.constant 0 : index
    %c0_54 = arith.constant 0 : index
    %74 = vector.load %arg8[%c0_52, %c0_53, %c0_54] : memref<1x8x256xf32, #tpu.memory_space<vmem>>, vector<1x8x256xf32>
    %75 = vector.shape_cast %74 : vector<1x8x256xf32> to vector<8x256xf32>
    %76 = vector.shape_cast %73 : vector<8x256xf32> to vector<1x8x256xf32>
    tpu.vector_store %arg8[%c0_52, %c0_53, %c0_54], %76 {strides = array<i32>} : memref<1x8x256xf32, #tpu.memory_space<vmem>>, vector<1x8x256xf32>,
    return
  }
  func.func @transform_0(%arg0: i32) -> (i32, i32, i32) {
    %c0_i32 = arith.constant 0 : i32
    %c0_i32_0 = arith.constant 0 : i32
    %c0_i32_1 = arith.constant 0 : i32
    return %arg0, %c0_i32, %c0_i32_0 : i32, i32, i32
  }
  func.func @transform_1(%arg0: i32) -> (i32, i32) {
    %c0_i32 = arith.constant 0 : i32
    %c0_i32_0 = arith.constant 0 : i32
    %c0_i32_1 = arith.constant 0 : i32
    return %c0_i32, %c0_i32_0 : i32, i32
  }
  func.func @transform_2(%arg0: i32) -> (i32, i32) {
    %c0_i32 = arith.constant 0 : i32
    %c0_i32_0 = arith.constant 0 : i32
    %c0_i32_1 = arith.constant 0 : i32
    return %c0_i32, %c0_i32_0 : i32, i32
  }
  func.func @transform_3(%arg0: i32) -> (i32, i32) {
    %c0_i32 = arith.constant 0 : i32
    %c0_i32_0 = arith.constant 0 : i32
    %c0_i32_1 = arith.constant 0 : i32
    return %c0_i32, %c0_i32_0 : i32, i32
  }
  func.func @transform_4(%arg0: i32) -> (i32, i32) {
    %c0_i32 = arith.constant 0 : i32
    %c0_i32_0 = arith.constant 0 : i32
    %c0_i32_1 = arith.constant 0 : i32
    return %c0_i32, %c0_i32_0 : i32, i32
  }
  func.func @transform_5(%arg0: i32) -> (i32, i32) {
    %c0_i32 = arith.constant 0 : i32
    %c0_i32_0 = arith.constant 0 : i32
    %c0_i32_1 = arith.constant 0 : i32
    return %c0_i32, %c0_i32_0 : i32, i32
  }
  func.func @transform_6(%arg0: i32) -> (i32, i32) {
    %c0_i32 = arith.constant 0 : i32
    %c0_i32_0 = arith.constant 0 : i32
    %c0_i32_1 = arith.constant 0 : i32
    return %c0_i32, %c0_i32_0 : i32, i32
  }
  func.func @transform_7(%arg0: i32) -> (i32, i32, i32) {
    %c0_i32 = arith.constant 0 : i32
    %c0_i32_0 = arith.constant 0 : i32
    %c0_i32_1 = arith.constant 0 : i32
    return %arg0, %c0_i32, %c0_i32_0 : i32, i32, i32
  }
}

</mosaic_0001>

<llo_original>
// kernel: tpu_custom_call.1
$region0: #{tpu_custom_call.1}
  #allocation0 [shape = 'u32[]', space=smem, size = 0x4, offset = 0x4, fixed_abs, tag = 'smem constant byte address 0x4 - core index']
  #allocation1 [shape = 'u32[72,128]{1,0:T(1,128)}', space=vmem, size = 0x9000, scoped, tag = 'internal scratch']
  %s0 = inlined_call_operand.vmem [shape: f32[2,9,256], index: 0, kind: input, shape index: {}]
  %s1 = inlined_call_operand.vmem [shape: f32[32,9], index: 1, kind: input, shape index: {}]
  %s2 = inlined_call_operand.vmem [shape: f32[32,9], index: 2, kind: input, shape index: {}]
  %s3 = inlined_call_operand.vmem [shape: f32[32,1], index: 3, kind: input, shape index: {}]
  %s4 = inlined_call_operand.vmem [shape: f32[8,32], index: 4, kind: input, shape index: {}]
  %s5 = inlined_call_operand.vmem [shape: f32[8,1], index: 5, kind: input, shape index: {}]
  %s6 = inlined_call_operand.vmem [shape: f32[9,256], index: 6, kind: input, shape index: {}]
  %s7 = inlined_call_operand.hbm [shape: f32[2,8,256], index: 7, kind: output, shape index: {}]
  %s8 = sld [smem:[#allocation0]]
  $region61: #{tpu_custom_call.1} parent=0
    _
  %s10 = ssub.s32 1, %s8
  %s11 = scalar_select 0, %s10, %s8
  $region1: #{tpu_custom_call.1} parent=0
    #allocation2 [shape = 'u8[16384]{0}', space=vmem, size = 0x4000, scoped, tag = 'output window, operand 0']
    #allocation3 [shape = 's32[2]{0}', space=sflag, size = 0x8, scoped, tag = 'scoped memory for tpu_custom_call.1']
    %12 = vsyncpa [#allocation3], 0
    %s13 = scalar_lea.sflag [#allocation3], 1
    %14 = vsyncpa %s13, 0
    loop: start=0, step=1, limit=4
    $region2: #{tpu_custom_call.1} parent=1 // loop_pre_header
      _
    $region3: #{tpu_custom_call.1} parent=1 // loop_header
      %s16 = sphi 0, %s20
      %p17 = scmp.ge.s32.totalorder %s16, 4
      %s26 = sphi 0, %s28
      %s29 = sphi 0, %s26
      %s30 = sphi 0, %s29
      %s46 = sphi 0, %s30
      %s50 = sphi 0, %s50
      %s52 = sphi 0, %s50
      %s53 = sphi 0, %s52
      %s67 = sphi 0, %s53
      %s71 = sphi 0, %s71
      %s73 = sphi 0, %s71
      %s74 = sphi 0, %s73
      %s88 = sphi 0, %s74
      %s92 = sphi 0, %s92
      %s94 = sphi 0, %s92
      %s95 = sphi 0, %s94
      %s109 = sphi 0, %s95
      %s113 = sphi 0, %s113
      %s115 = sphi 0, %s113
      %s116 = sphi 0, %s115
      %s130 = sphi 0, %s116
      %s134 = sphi 0, %s134
      %s136 = sphi 0, %s134
      %s137 = sphi 0, %s136
      %s151 = sphi 0, %s137
      %s155 = sphi 0, %s155
      %s157 = sphi 0, %s155
      %s158 = sphi 0, %s157
      %s172 = sphi 0, %s158
      %s178 = sphi 0, %s180
      %s181 = sphi 0, %s178
      %s182 = sphi 0, %s181
      %s198 = sphi 0, %s182
    $region4: #{tpu_custom_call.1} parent=1 // loop_header_branch
      %19 = sbr.rel (%p17) target = $region8
    $region5: #{tpu_custom_call.1} parent=1 // loop_body
      %s21 = ssub.s32 %s16, 1
      %s22 = ssub.s32 %s16, 2
      %s23 = sadd.s32 %s16, 1
      %s24 = ssub.s32 %s16, %s23
      %p25 = scmp.eq.s32.totalorder %s24, 0
      %s27 = sadd.s32 %s26, 1
      %s28 = scalar_select %p25, %s26, %s27
      %p31 = pneg %p25
      %p32 = scmp.eq.s32.totalorder %s16, 1
      %p33 = por %p31, %p32
      %p34 = scmp.ne.s32.totalorder %s26, %s29
      %p35 = scmp.eq.s32.totalorder %s16, 0
      %p36 = por %p34, %p35
      %p37 = scmp.ne.s32.totalorder %s26, %s29
      %p38 = scmp.eq.s32.totalorder %s21, 1
      %p39 = por %p37, %p38
      %p40 = scmp.ne.s32.totalorder %s29, %s30
      %p41 = scmp.eq.s32.totalorder %s21, 0
      %p42 = por %p40, %p41
      %p43 = scmp.ne.s32.totalorder %s29, %s30
      %p44 = scmp.eq.s32.totalorder %s22, 1
      %p45 = por %p43, %p44
      %p47 = scmp.ne.s32.totalorder %s30, %s46
      %p48 = scmp.eq.s32.totalorder %s22, 0
      %p49 = por %p47, %p48
      %s51 = sadd.s32 %s50, 1
      %p54 = scmp.eq.s32.totalorder %s16, 1
      %p55 = scmp.ne.s32.totalorder %s50, %s52
      %p56 = scmp.eq.s32.totalorder %s16, 0
      %p57 = por %p55, %p56
      %p58 = scmp.ne.s32.totalorder %s50, %s52
      %p59 = scmp.eq.s32.totalorder %s21, 1
      %p60 = por %p58, %p59
      %p61 = scmp.ne.s32.totalorder %s52, %s53
      %p62 = scmp.eq.s32.totalorder %s21, 0
      %p63 = por %p61, %p62
      %p64 = scmp.ne.s32.totalorder %s52, %s53
      %p65 = scmp.eq.s32.totalorder %s22, 1
      %p66 = por %p64, %p65
      %p68 = scmp.ne.s32.totalorder %s53, %s67
      %p69 = scmp.eq.s32.totalorder %s22, 0
      %p70 = por %p68, %p69
      %s72 = sadd.s32 %s71, 1
      %p75 = scmp.eq.s32.totalorder %s16, 1
      %p76 = scmp.ne.s32.totalorder %s71, %s73
      %p77 = scmp.eq.s32.totalorder %s16, 0
      %p78 = por %p76, %p77
      %p79 = scmp.ne.s32.totalorder %s71, %s73
      %p80 = scmp.eq.s32.totalorder %s21, 1
      %p81 = por %p79, %p80
      %p82 = scmp.ne.s32.totalorder %s73, %s74
      %p83 = scmp.eq.s32.totalorder %s21, 0
      %p84 = por %p82, %p83
      %p85 = scmp.ne.s32.totalorder %s73, %s74
      %p86 = scmp.eq.s32.totalorder %s22, 1
      %p87 = por %p85, %p86
      %p89 = scmp.ne.s32.totalorder %s74, %s88
      %p90 = scmp.eq.s32.totalorder %s22, 0
      %p91 = por %p89, %p90
      %s93 = sadd.s32 %s92, 1
      %p96 = scmp.eq.s32.totalorder %s16, 1
      %p97 = scmp.ne.s32.totalorder %s92, %s94
      %p98 = scmp.eq.s32.totalorder %s16, 0
      %p99 = por %p97, %p98
      %p100 = scmp.ne.s32.totalorder %s92, %s94
      %p101 = scmp.eq.s32.totalorder %s21, 1
      %p102 = por %p100, %p101
      %p103 = scmp.ne.s32.totalorder %s94, %s95
      %p104 = scmp.eq.s32.totalorder %s21, 0
      %p105 = por %p103, %p104
      %p106 = scmp.ne.s32.totalorder %s94, %s95
      %p107 = scmp.eq.s32.totalorder %s22, 1
      %p108 = por %p106, %p107
      %p110 = scmp.ne.s32.totalorder %s95, %s109
      %p111 = scmp.eq.s32.totalorder %s22, 0
      %p112 = por %p110, %p111
      %s114 = sadd.s32 %s113, 1
      %p117 = scmp.eq.s32.totalorder %s16, 1
      %p118 = scmp.ne.s32.totalorder %s113, %s115
      %p119 = scmp.eq.s32.totalorder %s16, 0
      %p120 = por %p118, %p119
      %p121 = scmp.ne.s32.totalorder %s113, %s115
      %p122 = scmp.eq.s32.totalorder %s21, 1
      %p123 = por %p121, %p122
      %p124 = scmp.ne.s32.totalorder %s115, %s116
      %p125 = scmp.eq.s32.totalorder %s21, 0
      %p126 = por %p124, %p125
      %p127 = scmp.ne.s32.totalorder %s115, %s116
      %p128 = scmp.eq.s32.totalorder %s22, 1
      %p129 = por %p127, %p128
      %p131 = scmp.ne.s32.totalorder %s116, %s130
      %p132 = scmp.eq.s32.totalorder %s22, 0
      %p133 = por %p131, %p132
      %s135 = sadd.s32 %s134, 1
      %p138 = scmp.eq.s32.totalorder %s16, 1
      %p139 = scmp.ne.s32.totalorder %s134, %s136
      %p140 = scmp.eq.s32.totalorder %s16, 0
      %p141 = por %p139, %p140
      %p142 = scmp.ne.s32.totalorder %s134, %s136
      %p143 = scmp.eq.s32.totalorder %s21, 1
      %p144 = por %p142, %p143
      %p145 = scmp.ne.s32.totalorder %s136, %s137
      %p146 = scmp.eq.s32.totalorder %s21, 0
      %p147 = por %p145, %p146
      %p148 = scmp.ne.s32.totalorder %s136, %s137
      %p149 = scmp.eq.s32.totalorder %s22, 1
      %p150 = por %p148, %p149
      %p152 = scmp.ne.s32.totalorder %s137, %s151
      %p153 = scmp.eq.s32.totalorder %s22, 0
      %p154 = por %p152, %p153
      %s156 = sadd.s32 %s155, 1
      %p159 = scmp.eq.s32.totalorder %s16, 1
      %p160 = scmp.ne.s32.totalorder %s155, %s157
      %p161 = scmp.eq.s32.totalorder %s16, 0
      %p162 = por %p160, %p161
      %p163 = scmp.ne.s32.totalorder %s155, %s157
      %p164 = scmp.eq.s32.totalorder %s21, 1
      %p165 = por %p163, %p164
      %p166 = scmp.ne.s32.totalorder %s157, %s158
      %p167 = scmp.eq.s32.totalorder %s21, 0
      %p168 = por %p166, %p167
      %p169 = scmp.ne.s32.totalorder %s157, %s158
      %p170 = scmp.eq.s32.totalorder %s22, 1
      %p171 = por %p169, %p170
      %p173 = scmp.ne.s32.totalorder %s158, %s172
      %p174 = scmp.eq.s32.totalorder %s22, 0
      %p175 = por %p173, %p174
      %s176 = ssub.s32 %s16, %s23
      %p177 = scmp.eq.s32.totalorder %s176, 0
      %s179 = sadd.s32 %s178, 1
      %s180 = scalar_select %p177, %s178, %s179
      %p183 = pneg %p177
      %p184 = scmp.eq.s32.totalorder %s16, 1
      %p185 = por %p183, %p184
      %p186 = scmp.ne.s32.totalorder %s178, %s181
      %p187 = scmp.eq.s32.totalorder %s16, 0
      %p188 = por %p186, %p187
      %p189 = scmp.ne.s32.totalorder %s178, %s181
      %p190 = scmp.eq.s32.totalorder %s21, 1
      %p191 = por %p189, %p190
      %p192 = scmp.ne.s32.totalorder %s181, %s182
      %p193 = scmp.eq.s32.totalorder %s21, 0
      %p194 = por %p192, %p193
      %p195 = scmp.ne.s32.totalorder %s181, %s182
      %p196 = scmp.eq.s32.totalorder %s22, 1
      %p197 = por %p195, %p196
      %p199 = scmp.ne.s32.totalorder %s182, %s198
      %p200 = scmp.eq.s32.totalorder %s22, 0
      %p201 = por %p199, %p200
      %p202 = scmp.le.s32.totalorder 1, %s16
      %p203 = scmp.lt.s32.totalorder %s16, 3
      %p204 = pnand %p202, %p203
      %p205 = pneg %p204
      // Predicated region
      $region9: #{tpu_custom_call.1} parent=5 // pred_check
        _
      $region10: #{tpu_custom_call.1} parent=5 // pred_check_branch
        %207 = sbr.rel (%p204) target = $region12
      $region11: #{tpu_custom_call.1} parent=5 // pred_region
        %s208 = ssub.s32 %s16, 1
        // Predicated region
        $region13: #{tpu_custom_call.1} parent=11 // pred_check
          %p209 = pneg %p63
        $region14: #{tpu_custom_call.1} parent=11 // pred_check_branch
          %211 = sbr.rel (%p209) target = $region16
        $region15: #{tpu_custom_call.1} parent=11 // pred_region
          _
        $region16: #{tpu_custom_call.1} parent=11 // pred_fallthru
          _
        // Predicated region
        $region17: #{tpu_custom_call.1} parent=11 // pred_check
          %p212 = pneg %p84
        $region18: #{tpu_custom_call.1} parent=11 // pred_check_branch
          %214 = sbr.rel (%p212) target = $region20
        $region19: #{tpu_custom_call.1} parent=11 // pred_region
          _
        $region20: #{tpu_custom_call.1} parent=11 // pred_fallthru
          _
        // Predicated region
        $region21: #{tpu_custom_call.1} parent=11 // pred_check
          %p215 = pneg %p105
        $region22: #{tpu_custom_call.1} parent=11 // pred_check_branch
          %217 = sbr.rel (%p215) target = $region24
        $region23: #{tpu_custom_call.1} parent=11 // pred_region
          _
        $region24: #{tpu_custom_call.1} parent=11 // pred_fallthru
          _
        // Predicated region
        $region25: #{tpu_custom_call.1} parent=11 // pred_check
          %p218 = pneg %p126
        $region26: #{tpu_custom_call.1} parent=11 // pred_check_branch
          %220 = sbr.rel (%p218) target = $region28
        $region27: #{tpu_custom_call.1} parent=11 // pred_region
          _
        $region28: #{tpu_custom_call.1} parent=11 // pred_fallthru
          _
        // Predicated region
        $region29: #{tpu_custom_call.1} parent=11 // pred_check
          %p221 = pneg %p147
        $region30: #{tpu_custom_call.1} parent=11 // pred_check_branch
          %223 = sbr.rel (%p221) target = $region32
        $region31: #{tpu_custom_call.1} parent=11 // pred_region
          _
        $region32: #{tpu_custom_call.1} parent=11 // pred_fallthru
          _
        // Predicated region
        $region33: #{tpu_custom_call.1} parent=11 // pred_check
          %p224 = pneg %p168
        $region34: #{tpu_custom_call.1} parent=11 // pred_check_branch
          %226 = sbr.rel (%p224) target = $region36
        $region35: #{tpu_custom_call.1} parent=11 // pred_region
          _
        $region36: #{tpu_custom_call.1} parent=11 // pred_fallthru
          _
      $region12: #{tpu_custom_call.1} parent=5 // pred_fallthru
        _
      %p227 = scmp.lt.s32.totalorder %s16, 2
      // Predicated region
      $region37: #{tpu_custom_call.1} parent=5 // pred_check
        %p228 = pneg %p227
      $region38: #{tpu_custom_call.1} parent=5 // pred_check_branch
        %230 = sbr.rel (%p228) target = $region40
      $region39: #{tpu_custom_call.1} parent=5 // pred_region
        // Predicated region
        $region41: #{tpu_custom_call.1} parent=39 // pred_check
          %p231 = pneg %p36
        $region42: #{tpu_custom_call.1} parent=39 // pred_check_branch
          %233 = sbr.rel (%p231) target = $region44
        $region43: #{tpu_custom_call.1} parent=39 // pred_region
          %p234 = scmp.lt.s32.totalorder %s16, 1
          %s235 = scalar_select %p234, %s16, 1
          %s236 = smul.addr %s235, 4
          %s237 = smul.addr %s236, 8
          %s238 = scalar_lea.vmem %s0, %s237
        $region44: #{tpu_custom_call.1} parent=39 // pred_fallthru
          _
      $region40: #{tpu_custom_call.1} parent=5 // pred_fallthru
        _
      %p239 = scmp.le.s32.totalorder 1, %s16
      %p240 = scmp.lt.s32.totalorder %s16, 3
      %p241 = pnand %p239, %p240
      %p242 = pneg %p241
      // Predicated region
      $region45: #{tpu_custom_call.1} parent=5 // pred_check
        _
      $region46: #{tpu_custom_call.1} parent=5 // pred_check_branch
        %244 = sbr.rel (%p241) target = $region48
      $region47: #{tpu_custom_call.1} parent=5 // pred_region
        %s245 = ssub.s32 %s16, 1
        %p246 = scmp.lt.s32.totalorder %s21, 1
        %s247 = scalar_select %p246, %s21, 1
        %s248 = smul.addr %s247, 4
        %s249 = smul.addr %s248, 8
        %s250 = scalar_lea.vmem %s0, %s249
        %p251 = pneg %p42
        %p252 = pneg %p39
        %p253 = pneg %p63
        %p254 = pneg %p60
        %p255 = pneg %p84
        %p256 = pneg %p81
        %p257 = pneg %p105
        %p258 = pneg %p102
        %p259 = pneg %p126
        %p260 = pneg %p123
        %p261 = pneg %p147
        %p262 = pneg %p144
        %p263 = pneg %p168
        %p264 = pneg %p165
        %p265 = pneg %p194
        %p266 = pneg %p191
        %s267 = sand.u32 %s181, 1
        %s268 = scalar_lea.sflag [#allocation3], %s267
        %s269 = sand.u32 %s181, 1
        %s270 = smul.addr %s269, 16
        %s271 = scalar_lea.vmem [#allocation2], %s270
        %p272 = scmp.lt.s32.totalorder %s21, 1
        %s273 = scalar_select %p272, %s21, 1
        %s274 = smul.addr %s273, 4
        %s275 = smul.addr %s274, 8
        %s276 = scalar_lea.vmem %s0, %s275
        %v277 = vld [vmem:[%s276] sm:$0xff]
        %v278 = vld [vmem:[%s276 + $0x8] sm:$0xff]
        %v279 = vld [vmem:[%s276 + $0x10] sm:$0x1]
        %v280 = vld [vmem:[%s276 + $0x18] sm:$0x1]
        %v281 = vld [vmem:[%s1] sm:$0xff]
        %v282 = vld [vmem:[%s1 + $0x8] sm:$0xff]
        %v283 = vld [vmem:[%s1 + $0x10] sm:$0xff]
        %v284 = vld [vmem:[%s1 + $0x18] sm:$0xff]
        %vm285 = vcmask 72704
        %v287 = vsel %vm285, %v281, 0
        %v290 = vsel %vm285, %v282, 0
        %v293 = vsel %vm285, %v283, 0
        %v296 = vsel %vm285, %v284, 0
        %vm298 = vcmask 1040384
        %v300 = vsel %vm298, %v279, 0
        %v303 = vsel %vm298, %v280, 0
        %305 = vmatpush.msra.mxu0 0.0
        %306 = vmatpush.msra.mxu0 0.0
        %307 = vmatpush.msra.mxu0 0.0
        %308 = vmatpush.msra.mxu0 0.0
        %309 = vmatpush.msra.mxu0 0.0
        %310 = vmatpush.msra.mxu0 0.0
        %311 = vmatpush.msra.mxu0 0.0
        %312 = vmatpush.msra.mxu0 0.0
        %313 = vmatpush.msra.mxu0 0.0
        %314 = vmatpush.msra.mxu0 0.0
        %315 = vmatpush.msra.mxu0 0.0
        %316 = vmatpush.msra.mxu0 0.0
        %317 = vmatpush.msra.mxu0 0.0
        %318 = vmatpush.msra.mxu0 0.0
        %319 = vmatpush.msra.mxu0 %v300
        %320 = vmatpush.msra.mxu0 %v277
        %321 = vmatmul.f32.gmra.mxu0 %v287
        %v322 = vpop.f32.mrf.mxu0
        %v323 = vadd.f32 0.0, %v322
        %324 = vmatmul.f32.gmra.mxu0 %v290
        %v325 = vpop.f32.mrf.mxu0
        %v326 = vadd.f32 0.0, %v325
        %327 = vmatmul.f32.gmra.mxu0 %v293
        %v328 = vpop.f32.mrf.mxu0
        %v329 = vadd.f32 0.0, %v328
        %330 = vmatmul.f32.gmra.mxu0 %v296
        %v331 = vpop.f32.mrf.mxu0
        %v332 = vadd.f32 0.0, %v331
        %333 = vdwg.mxu0
        %334 = vmatpush.msra.mxu0 0.0
        %335 = vmatpush.msra.mxu0 0.0
        %336 = vmatpush.msra.mxu0 0.0
        %337 = vmatpush.msra.mxu0 0.0
        %338 = vmatpush.msra.mxu0 0.0
        %339 = vmatpush.msra.mxu0 0.0
        %340 = vmatpush.msra.mxu0 0.0
        %341 = vmatpush.msra.mxu0 0.0
        %342 = vmatpush.msra.mxu0 0.0
        %343 = vmatpush.msra.mxu0 0.0
        %344 = vmatpush.msra.mxu0 0.0
        %345 = vmatpush.msra.mxu0 0.0
        %346 = vmatpush.msra.mxu0 0.0
        %347 = vmatpush.msra.mxu0 0.0
        %348 = vmatpush.msra.mxu0 %v303
        %349 = vmatpush.msra.mxu0 %v278
        %350 = vmatmul.f32.gmra.mxu0 %v287
        %v351 = vpop.f32.mrf.mxu0
        %v352 = vadd.f32 0.0, %v351
        %353 = vmatmul.f32.gmra.mxu0 %v290
        %v354 = vpop.f32.mrf.mxu0
        %v355 = vadd.f32 0.0, %v354
        %356 = vmatmul.f32.gmra.mxu0 %v293
        %v357 = vpop.f32.mrf.mxu0
        %v358 = vadd.f32 0.0, %v357
        %359 = vmatmul.f32.gmra.mxu0 %v296
        %v360 = vpop.f32.mrf.mxu0
        %v361 = vadd.f32 0.0, %v360
        %362 = vdwg.mxu0
        %v363 = vmax.f32 %v323, 0.0
        %v364 = vmax.f32 %v352, 0.0
        %v365 = vmax.f32 %v326, 0.0
        %v366 = vmax.f32 %v355, 0.0
        %v367 = vmax.f32 %v329, 0.0
        %v368 = vmax.f32 %v358, 0.0
        %v369 = vmax.f32 %v332, 0.0
        %v370 = vmax.f32 %v361, 0.0
        %v371 = vmin.f32 %v363, 6.0
        %v372 = vmin.f32 %v364, 6.0
        %v373 = vmin.f32 %v365, 6.0
        %v374 = vmin.f32 %v366, 6.0
        %v375 = vmin.f32 %v367, 6.0
        %v376 = vmin.f32 %v368, 6.0
        %v377 = vmin.f32 %v369, 6.0
        %v378 = vmin.f32 %v370, 6.0
        %379 = vrot.lane.b32.xlu0 %v371, 17
        %v380 = vpop.permute.xlu0 %379
        %381 = vrot.lane.b32.xlu0 %v373, 17
        %v382 = vpop.permute.xlu0 %381
        %383 = vrot.lane.b32.xlu0 %v375, 17
        %v384 = vpop.permute.xlu0 %383
        %385 = vrot.lane.b32.xlu0 %v377, 17
        %v386 = vpop.permute.xlu0 %385
        %387 = vrot.lane.b32.xlu0 %v372, 17
        %v388 = vpop.permute.xlu0 %387
        %389 = vrot.lane.b32.xlu0 %v374, 17
        %v390 = vpop.permute.xlu0 %389
        %391 = vrot.lane.b32.xlu0 %v376, 17
        %v392 = vpop.permute.xlu0 %391
        %393 = vrot.lane.b32.xlu0 %v378, 17
        %v394 = vpop.permute.xlu0 %393
        %v395 = vlaneseq
        %v396 = vand.u32 %v395, 127
        %vm397 = vcmp.lt.s32.totalorder %v396, 17
        %v398 = vsel %vm397, %v380, %v388
        %v399 = vsel %vm397, %v382, %v390
        %v400 = vsel %vm397, %v384, %v392
        %v401 = vsel %vm397, %v386, %v394
        %v402 = vsel %vm397, %v388, %v380
        %v403 = vsel %vm397, %v390, %v382
        %v404 = vsel %vm397, %v392, %v384
        %v405 = vsel %vm397, %v394, %v386
        %v406 = vld [vmem:[%s2] sm:$0xff]
        %v407 = vld [vmem:[%s2 + $0x8] sm:$0xff]
        %v408 = vld [vmem:[%s2 + $0x10] sm:$0xff]
        %v409 = vld [vmem:[%s2 + $0x18] sm:$0xff]
        %v410 = vld [vmem:[%s6] ss:$8 sm:$0x3]
        %v412 = vperm.slane %v410, 0
        %v413 = vperm.slane %v410, 1
        %vm414 = vcmask 7168
        %v416 = vsel %vm414, %v406, 0
        %v419 = vsel %vm414, %v407, 0
        %v422 = vsel %vm414, %v408, 0
        %v425 = vsel %vm414, %v409, 0
        %v427 = vsel %vm298, %v412, 0
        %v429 = vsel %vm298, %v413, 0
        %431 = vmatpush.msra.mxu0 0.0
        %432 = vmatpush.msra.mxu0 0.0
        %433 = vmatpush.msra.mxu0 0.0
        %434 = vmatpush.msra.mxu0 0.0
        %435 = vmatpush.msra.mxu0 0.0
        %436 = vmatpush.msra.mxu0 0.0
        %437 = vmatpush.msra.mxu0 0.0
        %438 = vmatpush.msra.mxu0 0.0
        %439 = vmatpush.msra.mxu0 0.0
        %440 = vmatpush.msra.mxu0 0.0
        %441 = vmatpush.msra.mxu0 0.0
        %442 = vmatpush.msra.mxu0 0.0
        %443 = vmatpush.msra.mxu0 0.0
        %444 = vmatpush.msra.mxu0 0.0
        %445 = vmatpush.msra.mxu0 0.0
        %446 = vmatpush.msra.mxu0 %v427
        %447 = vmatmul.f32.gmra.mxu0 %v416
        %v448 = vpop.f32.mrf.mxu0
        %v449 = vadd.f32 0.0, %v448
        %450 = vmatmul.f32.gmra.mxu0 %v419
        %v451 = vpop.f32.mrf.mxu0
        %v452 = vadd.f32 0.0, %v451
        %453 = vmatmul.f32.gmra.mxu0 %v422
        %v454 = vpop.f32.mrf.mxu0
        %v455 = vadd.f32 0.0, %v454
        %456 = vmatmul.f32.gmra.mxu0 %v425
        %v457 = vpop.f32.mrf.mxu0
        %v458 = vadd.f32 0.0, %v457
        %459 = vdwg.mxu0
        %460 = vmatpush.msra.mxu0 0.0
        %461 = vmatpush.msra.mxu0 0.0
        %462 = vmatpush.msra.mxu0 0.0
        %463 = vmatpush.msra.mxu0 0.0
        %464 = vmatpush.msra.mxu0 0.0
        %465 = vmatpush.msra.mxu0 0.0
        %466 = vmatpush.msra.mxu0 0.0
        %467 = vmatpush.msra.mxu0 0.0
        %468 = vmatpush.msra.mxu0 0.0
        %469 = vmatpush.msra.mxu0 0.0
        %470 = vmatpush.msra.mxu0 0.0
        %471 = vmatpush.msra.mxu0 0.0
        %472 = vmatpush.msra.mxu0 0.0
        %473 = vmatpush.msra.mxu0 0.0
        %474 = vmatpush.msra.mxu0 0.0
        %475 = vmatpush.msra.mxu0 %v429
        %476 = vmatmul.f32.gmra.mxu0 %v416
        %v477 = vpop.f32.mrf.mxu0
        %v478 = vadd.f32 0.0, %v477
        %479 = vmatmul.f32.gmra.mxu0 %v419
        %v480 = vpop.f32.mrf.mxu0
        %v481 = vadd.f32 0.0, %v480
        %482 = vmatmul.f32.gmra.mxu0 %v422
        %v483 = vpop.f32.mrf.mxu0
        %v484 = vadd.f32 0.0, %v483
        %485 = vmatmul.f32.gmra.mxu0 %v425
        %v486 = vpop.f32.mrf.mxu0
        %v487 = vadd.f32 0.0, %v486
        %488 = vdwg.mxu0
        %v489 = vmul.f32 %v402, %v449
        %v490 = vmul.f32 %v398, %v478
        %v491 = vmul.f32 %v403, %v452
        %v492 = vmul.f32 %v399, %v481
        %v493 = vmul.f32 %v404, %v455
        %v494 = vmul.f32 %v400, %v484
        %v495 = vmul.f32 %v405, %v458
        %v496 = vmul.f32 %v401, %v487
        %497 = vrot.lane.b32.xlu0 %v371, 16
        %v498 = vpop.permute.xlu0 %497
        %499 = vrot.lane.b32.xlu0 %v373, 16
        %v500 = vpop.permute.xlu0 %499
        %501 = vrot.lane.b32.xlu0 %v375, 16
        %v502 = vpop.permute.xlu0 %501
        %503 = vrot.lane.b32.xlu0 %v377, 16
        %v504 = vpop.permute.xlu0 %503
        %505 = vrot.lane.b32.xlu0 %v372, 16
        %v506 = vpop.permute.xlu0 %505
        %507 = vrot.lane.b32.xlu0 %v374, 16
        %v508 = vpop.permute.xlu0 %507
        %509 = vrot.lane.b32.xlu0 %v376, 16
        %v510 = vpop.permute.xlu0 %509
        %511 = vrot.lane.b32.xlu0 %v378, 16
        %v512 = vpop.permute.xlu0 %511
        %vm513 = vcmp.lt.s32.totalorder %v396, 16
        %v514 = vsel %vm513, %v498, %v506
        %v515 = vsel %vm513, %v500, %v508
        %v516 = vsel %vm513, %v502, %v510
        %v517 = vsel %vm513, %v504, %v512
        %v518 = vsel %vm513, %v506, %v498
        %v519 = vsel %vm513, %v508, %v500
        %v520 = vsel %vm513, %v510, %v502
        %v521 = vsel %vm513, %v512, %v504
        %s522 = scalar_lea.vmem %s6, 1
        %v523 = vld [vmem:[%s522] ss:$8 sm:$0x3]
        %524 = vrot.lane.b32.xlu0 %v406, 127
        %v525 = vpop.permute.xlu0 %524
        %526 = vrot.lane.b32.xlu0 %v407, 127
        %v527 = vpop.permute.xlu0 %526
        %528 = vrot.lane.b32.xlu0 %v408, 127
        %v529 = vpop.permute.xlu0 %528
        %530 = vrot.lane.b32.xlu0 %v409, 127
        %v531 = vpop.permute.xlu0 %530
        %v533 = vperm.slane %v523, 0
        %v534 = vperm.slane %v523, 1
        %v535 = vsel %vm414, %v525, 0
        %v537 = vsel %vm414, %v527, 0
        %v539 = vsel %vm414, %v529, 0
        %v541 = vsel %vm414, %v531, 0
        %v543 = vsel %vm298, %v533, 0
        %v545 = vsel %vm298, %v534, 0
        %547 = vmatpush.msra.mxu0 0.0
        %548 = vmatpush.msra.mxu0 0.0
        %549 = vmatpush.msra.mxu0 0.0
        %550 = vmatpush.msra.mxu0 0.0
        %551 = vmatpush.msra.mxu0 0.0
        %552 = vmatpush.msra.mxu0 0.0
        %553 = vmatpush.msra.mxu0 0.0
        %554 = vmatpush.msra.mxu0 0.0
        %555 = vmatpush.msra.mxu0 0.0
        %556 = vmatpush.msra.mxu0 0.0
        %557 = vmatpush.msra.mxu0 0.0
        %558 = vmatpush.msra.mxu0 0.0
        %559 = vmatpush.msra.mxu0 0.0
        %560 = vmatpush.msra.mxu0 0.0
        %561 = vmatpush.msra.mxu0 0.0
        %562 = vmatpush.msra.mxu0 %v543
        %563 = vmatmul.f32.gmra.mxu0 %v535
        %v564 = vpop.f32.mrf.mxu0
        %v565 = vadd.f32 0.0, %v564
        %566 = vmatmul.f32.gmra.mxu0 %v537
        %v567 = vpop.f32.mrf.mxu0
        %v568 = vadd.f32 0.0, %v567
        %569 = vmatmul.f32.gmra.mxu0 %v539
        %v570 = vpop.f32.mrf.mxu0
        %v571 = vadd.f32 0.0, %v570
        %572 = vmatmul.f32.gmra.mxu0 %v541
        %v573 = vpop.f32.mrf.mxu0
        %v574 = vadd.f32 0.0, %v573
        %575 = vdwg.mxu0
        %576 = vmatpush.msra.mxu0 0.0
        %577 = vmatpush.msra.mxu0 0.0
        %578 = vmatpush.msra.mxu0 0.0
        %579 = vmatpush.msra.mxu0 0.0
        %580 = vmatpush.msra.mxu0 0.0
        %581 = vmatpush.msra.mxu0 0.0
        %582 = vmatpush.msra.mxu0 0.0
        %583 = vmatpush.msra.mxu0 0.0
        %584 = vmatpush.msra.mxu0 0.0
        %585 = vmatpush.msra.mxu0 0.0
        %586 = vmatpush.msra.mxu0 0.0
        %587 = vmatpush.msra.mxu0 0.0
        %588 = vmatpush.msra.mxu0 0.0
        %589 = vmatpush.msra.mxu0 0.0
        %590 = vmatpush.msra.mxu0 0.0
        %591 = vmatpush.msra.mxu0 %v545
        %592 = vmatmul.f32.gmra.mxu0 %v535
        %v593 = vpop.f32.mrf.mxu0
        %v594 = vadd.f32 0.0, %v593
        %595 = vmatmul.f32.gmra.mxu0 %v537
        %v596 = vpop.f32.mrf.mxu0
        %v597 = vadd.f32 0.0, %v596
        %598 = vmatmul.f32.gmra.mxu0 %v539
        %v599 = vpop.f32.mrf.mxu0
        %v600 = vadd.f32 0.0, %v599
        %601 = vmatmul.f32.gmra.mxu0 %v541
        %v602 = vpop.f32.mrf.mxu0
        %v603 = vadd.f32 0.0, %v602
        %604 = vdwg.mxu0
        %v605 = vmul.f32 %v518, %v565
        %v606 = vmul.f32 %v514, %v594
        %v607 = vmul.f32 %v519, %v568
        %v608 = vmul.f32 %v515, %v597
        %v609 = vmul.f32 %v520, %v571
        %v610 = vmul.f32 %v516, %v600
        %v611 = vmul.f32 %v521, %v574
        %v612 = vmul.f32 %v517, %v603
        %v613 = vadd.f32 %v489, %v605
        %v614 = vadd.f32 %v490, %v606
        %v615 = vadd.f32 %v491, %v607
        %v616 = vadd.f32 %v492, %v608
        %v617 = vadd.f32 %v493, %v609
        %v618 = vadd.f32 %v494, %v610
        %v619 = vadd.f32 %v495, %v611
        %v620 = vadd.f32 %v496, %v612
        %621 = vrot.lane.b32.xlu0 %v371, 15
        %v622 = vpop.permute.xlu0 %621
        %623 = vrot.lane.b32.xlu0 %v373, 15
        %v624 = vpop.permute.xlu0 %623
        %625 = vrot.lane.b32.xlu0 %v375, 15
        %v626 = vpop.permute.xlu0 %625
        %627 = vrot.lane.b32.xlu0 %v377, 15
        %v628 = vpop.permute.xlu0 %627
        %629 = vrot.lane.b32.xlu0 %v372, 15
        %v630 = vpop.permute.xlu0 %629
        %631 = vrot.lane.b32.xlu0 %v374, 15
        %v632 = vpop.permute.xlu0 %631
        %633 = vrot.lane.b32.xlu0 %v376, 15
        %v634 = vpop.permute.xlu0 %633
        %635 = vrot.lane.b32.xlu0 %v378, 15
        %v636 = vpop.permute.xlu0 %635
        %vm637 = vcmp.lt.s32.totalorder %v396, 15
        %v638 = vsel %vm637, %v622, %v630
        %v639 = vsel %vm637, %v624, %v632
        %v640 = vsel %vm637, %v626, %v634
        %v641 = vsel %vm637, %v628, %v636
        %v642 = vsel %vm637, %v630, %v622
        %v643 = vsel %vm637, %v632, %v624
        %v644 = vsel %vm637, %v634, %v626
        %v645 = vsel %vm637, %v636, %v628
        %s646 = scalar_lea.vmem %s6, 2
        %v647 = vld [vmem:[%s646] ss:$8 sm:$0x3]
        %648 = vrot.lane.b32.xlu0 %v406, 126
        %v649 = vpop.permute.xlu0 %648
        %650 = vrot.lane.b32.xlu0 %v407, 126
        %v651 = vpop.permute.xlu0 %650
        %652 = vrot.lane.b32.xlu0 %v408, 126
        %v653 = vpop.permute.xlu0 %652
        %654 = vrot.lane.b32.xlu0 %v409, 126
        %v655 = vpop.permute.xlu0 %654
        %v657 = vperm.slane %v647, 0
        %v658 = vperm.slane %v647, 1
        %v659 = vsel %vm414, %v649, 0
        %v661 = vsel %vm414, %v651, 0
        %v663 = vsel %vm414, %v653, 0
        %v665 = vsel %vm414, %v655, 0
        %v667 = vsel %vm298, %v657, 0
        %v669 = vsel %vm298, %v658, 0
        %671 = vmatpush.msra.mxu0 0.0
        %672 = vmatpush.msra.mxu0 0.0
        %673 = vmatpush.msra.mxu0 0.0
        %674 = vmatpush.msra.mxu0 0.0
        %675 = vmatpush.msra.mxu0 0.0
        %676 = vmatpush.msra.mxu0 0.0
        %677 = vmatpush.msra.mxu0 0.0
        %678 = vmatpush.msra.mxu0 0.0
        %679 = vmatpush.msra.mxu0 0.0
        %680 = vmatpush.msra.mxu0 0.0
        %681 = vmatpush.msra.mxu0 0.0
        %682 = vmatpush.msra.mxu0 0.0
        %683 = vmatpush.msra.mxu0 0.0
        %684 = vmatpush.msra.mxu0 0.0
        %685 = vmatpush.msra.mxu0 0.0
        %686 = vmatpush.msra.mxu0 %v667
        %687 = vmatmul.f32.gmra.mxu0 %v659
        %v688 = vpop.f32.mrf.mxu0
        %v689 = vadd.f32 0.0, %v688
        %690 = vmatmul.f32.gmra.mxu0 %v661
        %v691 = vpop.f32.mrf.mxu0
        %v692 = vadd.f32 0.0, %v691
        %693 = vmatmul.f32.gmra.mxu0 %v663
        %v694 = vpop.f32.mrf.mxu0
        %v695 = vadd.f32 0.0, %v694
        %696 = vmatmul.f32.gmra.mxu0 %v665
        %v697 = vpop.f32.mrf.mxu0
        %v698 = vadd.f32 0.0, %v697
        %699 = vdwg.mxu0
        %700 = vmatpush.msra.mxu0 0.0
        %701 = vmatpush.msra.mxu0 0.0
        %702 = vmatpush.msra.mxu0 0.0
        %703 = vmatpush.msra.mxu0 0.0
        %704 = vmatpush.msra.mxu0 0.0
        %705 = vmatpush.msra.mxu0 0.0
        %706 = vmatpush.msra.mxu0 0.0
        %707 = vmatpush.msra.mxu0 0.0
        %708 = vmatpush.msra.mxu0 0.0
        %709 = vmatpush.msra.mxu0 0.0
        %710 = vmatpush.msra.mxu0 0.0
        %711 = vmatpush.msra.mxu0 0.0
        %712 = vmatpush.msra.mxu0 0.0
        %713 = vmatpush.msra.mxu0 0.0
        %714 = vmatpush.msra.mxu0 0.0
        %715 = vmatpush.msra.mxu0 %v669
        %716 = vmatmul.f32.gmra.mxu0 %v659
        %v717 = vpop.f32.mrf.mxu0
        %v718 = vadd.f32 0.0, %v717
        %719 = vmatmul.f32.gmra.mxu0 %v661
        %v720 = vpop.f32.mrf.mxu0
        %v721 = vadd.f32 0.0, %v720
        %722 = vmatmul.f32.gmra.mxu0 %v663
        %v723 = vpop.f32.mrf.mxu0
        %v724 = vadd.f32 0.0, %v723
        %725 = vmatmul.f32.gmra.mxu0 %v665
        %v726 = vpop.f32.mrf.mxu0
        %v727 = vadd.f32 0.0, %v726
        %728 = vdwg.mxu0
        %v729 = vmul.f32 %v642, %v689
        %v730 = vmul.f32 %v638, %v718
        %v731 = vmul.f32 %v643, %v692
        %v732 = vmul.f32 %v639, %v721
        %v733 = vmul.f32 %v644, %v695
        %v734 = vmul.f32 %v640, %v724
        %v735 = vmul.f32 %v645, %v698
        %v736 = vmul.f32 %v641, %v727
        %v737 = vadd.f32 %v613, %v729
        %v738 = vadd.f32 %v614, %v730
        %v739 = vadd.f32 %v615, %v731
        %v740 = vadd.f32 %v616, %v732
        %v741 = vadd.f32 %v617, %v733
        %v742 = vadd.f32 %v618, %v734
        %v743 = vadd.f32 %v619, %v735
        %v744 = vadd.f32 %v620, %v736
        %745 = vrot.lane.b32.xlu0 %v371, 1
        %v746 = vpop.permute.xlu0 %745
        %747 = vrot.lane.b32.xlu0 %v373, 1
        %v748 = vpop.permute.xlu0 %747
        %749 = vrot.lane.b32.xlu0 %v375, 1
        %v750 = vpop.permute.xlu0 %749
        %751 = vrot.lane.b32.xlu0 %v377, 1
        %v752 = vpop.permute.xlu0 %751
        %753 = vrot.lane.b32.xlu0 %v372, 1
        %v754 = vpop.permute.xlu0 %753
        %755 = vrot.lane.b32.xlu0 %v374, 1
        %v756 = vpop.permute.xlu0 %755
        %757 = vrot.lane.b32.xlu0 %v376, 1
        %v758 = vpop.permute.xlu0 %757
        %759 = vrot.lane.b32.xlu0 %v378, 1
        %v760 = vpop.permute.xlu0 %759
        %vm761 = vcmp.lt.s32.totalorder %v396, 1
        %v762 = vsel %vm761, %v746, %v754
        %v763 = vsel %vm761, %v748, %v756
        %v764 = vsel %vm761, %v750, %v758
        %v765 = vsel %vm761, %v752, %v760
        %v766 = vsel %vm761, %v754, %v746
        %v767 = vsel %vm761, %v756, %v748
        %v768 = vsel %vm761, %v758, %v750
        %v769 = vsel %vm761, %v760, %v752
        %s770 = scalar_lea.vmem %s6, 3
        %v771 = vld [vmem:[%s770] ss:$8 sm:$0x3]
        %772 = vrot.lane.b32.xlu0 %v406, 125
        %v773 = vpop.permute.xlu0 %772
        %774 = vrot.lane.b32.xlu0 %v407, 125
        %v775 = vpop.permute.xlu0 %774
        %776 = vrot.lane.b32.xlu0 %v408, 125
        %v777 = vpop.permute.xlu0 %776
        %778 = vrot.lane.b32.xlu0 %v409, 125
        %v779 = vpop.permute.xlu0 %778
        %v781 = vperm.slane %v771, 0
        %v782 = vperm.slane %v771, 1
        %v783 = vsel %vm414, %v773, 0
        %v785 = vsel %vm414, %v775, 0
        %v787 = vsel %vm414, %v777, 0
        %v789 = vsel %vm414, %v779, 0
        %v791 = vsel %vm298, %v781, 0
        %v793 = vsel %vm298, %v782, 0
        %795 = vmatpush.msra.mxu0 0.0
        %796 = vmatpush.msra.mxu0 0.0
        %797 = vmatpush.msra.mxu0 0.0
        %798 = vmatpush.msra.mxu0 0.0
        %799 = vmatpush.msra.mxu0 0.0
        %800 = vmatpush.msra.mxu0 0.0
        %801 = vmatpush.msra.mxu0 0.0
        %802 = vmatpush.msra.mxu0 0.0
        %803 = vmatpush.msra.mxu0 0.0
        %804 = vmatpush.msra.mxu0 0.0
        %805 = vmatpush.msra.mxu0 0.0
        %806 = vmatpush.msra.mxu0 0.0
        %807 = vmatpush.msra.mxu0 0.0
        %808 = vmatpush.msra.mxu0 0.0
        %809 = vmatpush.msra.mxu0 0.0
        %810 = vmatpush.msra.mxu0 %v791
        %811 = vmatmul.f32.gmra.mxu0 %v783
        %v812 = vpop.f32.mrf.mxu0
        %v813 = vadd.f32 0.0, %v812
        %814 = vmatmul.f32.gmra.mxu0 %v785
        %v815 = vpop.f32.mrf.mxu0
        %v816 = vadd.f32 0.0, %v815
        %817 = vmatmul.f32.gmra.mxu0 %v787
        %v818 = vpop.f32.mrf.mxu0
        %v819 = vadd.f32 0.0, %v818
        %820 = vmatmul.f32.gmra.mxu0 %v789
        %v821 = vpop.f32.mrf.mxu0
        %v822 = vadd.f32 0.0, %v821
        %823 = vdwg.mxu0
        %824 = vmatpush.msra.mxu0 0.0
        %825 = vmatpush.msra.mxu0 0.0
        %826 = vmatpush.msra.mxu0 0.0
        %827 = vmatpush.msra.mxu0 0.0
        %828 = vmatpush.msra.mxu0 0.0
        %829 = vmatpush.msra.mxu0 0.0
        %830 = vmatpush.msra.mxu0 0.0
        %831 = vmatpush.msra.mxu0 0.0
        %832 = vmatpush.msra.mxu0 0.0
        %833 = vmatpush.msra.mxu0 0.0
        %834 = vmatpush.msra.mxu0 0.0
        %835 = vmatpush.msra.mxu0 0.0
        %836 = vmatpush.msra.mxu0 0.0
        %837 = vmatpush.msra.mxu0 0.0
        %838 = vmatpush.msra.mxu0 0.0
        %839 = vmatpush.msra.mxu0 %v793
        %840 = vmatmul.f32.gmra.mxu0 %v783
        %v841 = vpop.f32.mrf.mxu0
        %v842 = vadd.f32 0.0, %v841
        %843 = vmatmul.f32.gmra.mxu0 %v785
        %v844 = vpop.f32.mrf.mxu0
        %v845 = vadd.f32 0.0, %v844
        %846 = vmatmul.f32.gmra.mxu0 %v787
        %v847 = vpop.f32.mrf.mxu0
        %v848 = vadd.f32 0.0, %v847
        %849 = vmatmul.f32.gmra.mxu0 %v789
        %v850 = vpop.f32.mrf.mxu0
        %v851 = vadd.f32 0.0, %v850
        %852 = vdwg.mxu0
        %v853 = vmul.f32 %v766, %v813
        %v854 = vmul.f32 %v762, %v842
        %v855 = vmul.f32 %v767, %v816
        %v856 = vmul.f32 %v763, %v845
        %v857 = vmul.f32 %v768, %v819
        %v858 = vmul.f32 %v764, %v848
        %v859 = vmul.f32 %v769, %v822
        %v860 = vmul.f32 %v765, %v851
        %v861 = vadd.f32 %v737, %v853
        %v862 = vadd.f32 %v738, %v854
        %v863 = vadd.f32 %v739, %v855
        %v864 = vadd.f32 %v740, %v856
        %v865 = vadd.f32 %v741, %v857
        %v866 = vadd.f32 %v742, %v858
        %v867 = vadd.f32 %v743, %v859
        %v868 = vadd.f32 %v744, %v860
        %s869 = scalar_lea.vmem %s6, 4
        %v870 = vld [vmem:[%s869] ss:$8 sm:$0x3]
        %871 = vrot.lane.b32.xlu0 %v406, 124
        %v872 = vpop.permute.xlu0 %871
        %873 = vrot.lane.b32.xlu0 %v407, 124
        %v874 = vpop.permute.xlu0 %873
        %875 = vrot.lane.b32.xlu0 %v408, 124
        %v876 = vpop.permute.xlu0 %875
        %877 = vrot.lane.b32.xlu0 %v409, 124
        %v878 = vpop.permute.xlu0 %877
        %v880 = vperm.slane %v870, 0
        %v881 = vperm.slane %v870, 1
        %v882 = vsel %vm414, %v872, 0
        %v884 = vsel %vm414, %v874, 0
        %v886 = vsel %vm414, %v876, 0
        %v888 = vsel %vm414, %v878, 0
        %v890 = vsel %vm298, %v880, 0
        %v892 = vsel %vm298, %v881, 0
        %894 = vmatpush.msra.mxu0 0.0
        %895 = vmatpush.msra.mxu0 0.0
        %896 = vmatpush.msra.mxu0 0.0
        %897 = vmatpush.msra.mxu0 0.0
        %898 = vmatpush.msra.mxu0 0.0
        %899 = vmatpush.msra.mxu0 0.0
        %900 = vmatpush.msra.mxu0 0.0
        %901 = vmatpush.msra.mxu0 0.0
        %902 = vmatpush.msra.mxu0 0.0
        %903 = vmatpush.msra.mxu0 0.0
        %904 = vmatpush.msra.mxu0 0.0
        %905 = vmatpush.msra.mxu0 0.0
        %906 = vmatpush.msra.mxu0 0.0
        %907 = vmatpush.msra.mxu0 0.0
        %908 = vmatpush.msra.mxu0 0.0
        %909 = vmatpush.msra.mxu0 %v890
        %910 = vmatmul.f32.gmra.mxu0 %v882
        %v911 = vpop.f32.mrf.mxu0
        %v912 = vadd.f32 0.0, %v911
        %913 = vmatmul.f32.gmra.mxu0 %v884
        %v914 = vpop.f32.mrf.mxu0
        %v915 = vadd.f32 0.0, %v914
        %916 = vmatmul.f32.gmra.mxu0 %v886
        %v917 = vpop.f32.mrf.mxu0
        %v918 = vadd.f32 0.0, %v917
        %919 = vmatmul.f32.gmra.mxu0 %v888
        %v920 = vpop.f32.mrf.mxu0
        %v921 = vadd.f32 0.0, %v920
        %922 = vdwg.mxu0
        %923 = vmatpush.msra.mxu0 0.0
        %924 = vmatpush.msra.mxu0 0.0
        %925 = vmatpush.msra.mxu0 0.0
        %926 = vmatpush.msra.mxu0 0.0
        %927 = vmatpush.msra.mxu0 0.0
        %928 = vmatpush.msra.mxu0 0.0
        %929 = vmatpush.msra.mxu0 0.0
        %930 = vmatpush.msra.mxu0 0.0
        %931 = vmatpush.msra.mxu0 0.0
        %932 = vmatpush.msra.mxu0 0.0
        %933 = vmatpush.msra.mxu0 0.0
        %934 = vmatpush.msra.mxu0 0.0
        %935 = vmatpush.msra.mxu0 0.0
        %936 = vmatpush.msra.mxu0 0.0
        %937 = vmatpush.msra.mxu0 0.0
        %938 = vmatpush.msra.mxu0 %v892
        %939 = vmatmul.f32.gmra.mxu0 %v882
        %v940 = vpop.f32.mrf.mxu0
        %v941 = vadd.f32 0.0, %v940
        %942 = vmatmul.f32.gmra.mxu0 %v884
        %v943 = vpop.f32.mrf.mxu0
        %v944 = vadd.f32 0.0, %v943
        %945 = vmatmul.f32.gmra.mxu0 %v886
        %v946 = vpop.f32.mrf.mxu0
        %v947 = vadd.f32 0.0, %v946
        %948 = vmatmul.f32.gmra.mxu0 %v888
        %v949 = vpop.f32.mrf.mxu0
        %v950 = vadd.f32 0.0, %v949
        %951 = vdwg.mxu0
        %v952 = vmul.f32 %v371, %v912
        %v953 = vmul.f32 %v372, %v941
        %v954 = vmul.f32 %v373, %v915
        %v955 = vmul.f32 %v374, %v944
        %v956 = vmul.f32 %v375, %v918
        %v957 = vmul.f32 %v376, %v947
        %v958 = vmul.f32 %v377, %v921
        %v959 = vmul.f32 %v378, %v950
        %v960 = vadd.f32 %v861, %v952
        %v961 = vadd.f32 %v862, %v953
        %v962 = vadd.f32 %v863, %v954
        %v963 = vadd.f32 %v864, %v955
        %v964 = vadd.f32 %v865, %v956
        %v965 = vadd.f32 %v866, %v957
        %v966 = vadd.f32 %v867, %v958
        %v967 = vadd.f32 %v868, %v959
        %968 = vrot.lane.b32.xlu0 %v371, 127
        %v969 = vpop.permute.xlu0 %968
        %970 = vrot.lane.b32.xlu0 %v373, 127
        %v971 = vpop.permute.xlu0 %970
        %972 = vrot.lane.b32.xlu0 %v375, 127
        %v973 = vpop.permute.xlu0 %972
        %974 = vrot.lane.b32.xlu0 %v377, 127
        %v975 = vpop.permute.xlu0 %974
        %976 = vrot.lane.b32.xlu0 %v372, 127
        %v977 = vpop.permute.xlu0 %976
        %978 = vrot.lane.b32.xlu0 %v374, 127
        %v979 = vpop.permute.xlu0 %978
        %980 = vrot.lane.b32.xlu0 %v376, 127
        %v981 = vpop.permute.xlu0 %980
        %982 = vrot.lane.b32.xlu0 %v378, 127
        %v983 = vpop.permute.xlu0 %982
        %vm984 = vcmp.lt.s32.totalorder %v396, 127
        %v985 = vsel %vm984, %v969, %v977
        %v986 = vsel %vm984, %v971, %v979
        %v987 = vsel %vm984, %v973, %v981
        %v988 = vsel %vm984, %v975, %v983
        %v989 = vsel %vm984, %v977, %v969
        %v990 = vsel %vm984, %v979, %v971
        %v991 = vsel %vm984, %v981, %v973
        %v992 = vsel %vm984, %v983, %v975
        %s993 = scalar_lea.vmem %s6, 5
        %v994 = vld [vmem:[%s993] ss:$8 sm:$0x3]
        %995 = vrot.lane.b32.xlu0 %v406, 123
        %v996 = vpop.permute.xlu0 %995
        %997 = vrot.lane.b32.xlu0 %v407, 123
        %v998 = vpop.permute.xlu0 %997
        %999 = vrot.lane.b32.xlu0 %v408, 123
        %v1000 = vpop.permute.xlu0 %999
        %1001 = vrot.lane.b32.xlu0 %v409, 123
        %v1002 = vpop.permute.xlu0 %1001
        %v1004 = vperm.slane %v994, 0
        %v1005 = vperm.slane %v994, 1
        %v1006 = vsel %vm414, %v996, 0
        %v1008 = vsel %vm414, %v998, 0
        %v1010 = vsel %vm414, %v1000, 0
        %v1012 = vsel %vm414, %v1002, 0
        %v1014 = vsel %vm298, %v1004, 0
        %v1016 = vsel %vm298, %v1005, 0
        %1018 = vmatpush.msra.mxu0 0.0
        %1019 = vmatpush.msra.mxu0 0.0
        %1020 = vmatpush.msra.mxu0 0.0
        %1021 = vmatpush.msra.mxu0 0.0
        %1022 = vmatpush.msra.mxu0 0.0
        %1023 = vmatpush.msra.mxu0 0.0
        %1024 = vmatpush.msra.mxu0 0.0
        %1025 = vmatpush.msra.mxu0 0.0
        %1026 = vmatpush.msra.mxu0 0.0
        %1027 = vmatpush.msra.mxu0 0.0
        %1028 = vmatpush.msra.mxu0 0.0
        %1029 = vmatpush.msra.mxu0 0.0
        %1030 = vmatpush.msra.mxu0 0.0
        %1031 = vmatpush.msra.mxu0 0.0
        %1032 = vmatpush.msra.mxu0 0.0
        %1033 = vmatpush.msra.mxu0 %v1014
        %1034 = vmatmul.f32.gmra.mxu0 %v1006
        %v1035 = vpop.f32.mrf.mxu0
        %v1036 = vadd.f32 0.0, %v1035
        %1037 = vmatmul.f32.gmra.mxu0 %v1008
        %v1038 = vpop.f32.mrf.mxu0
        %v1039 = vadd.f32 0.0, %v1038
        %1040 = vmatmul.f32.gmra.mxu0 %v1010
        %v1041 = vpop.f32.mrf.mxu0
        %v1042 = vadd.f32 0.0, %v1041
        %1043 = vmatmul.f32.gmra.mxu0 %v1012
        %v1044 = vpop.f32.mrf.mxu0
        %v1045 = vadd.f32 0.0, %v1044
        %1046 = vdwg.mxu0
        %1047 = vmatpush.msra.mxu0 0.0
        %1048 = vmatpush.msra.mxu0 0.0
        %1049 = vmatpush.msra.mxu0 0.0
        %1050 = vmatpush.msra.mxu0 0.0
        %1051 = vmatpush.msra.mxu0 0.0
        %1052 = vmatpush.msra.mxu0 0.0
        %1053 = vmatpush.msra.mxu0 0.0
        %1054 = vmatpush.msra.mxu0 0.0
        %1055 = vmatpush.msra.mxu0 0.0
        %1056 = vmatpush.msra.mxu0 0.0
        %1057 = vmatpush.msra.mxu0 0.0
        %1058 = vmatpush.msra.mxu0 0.0
        %1059 = vmatpush.msra.mxu0 0.0
        %1060 = vmatpush.msra.mxu0 0.0
        %1061 = vmatpush.msra.mxu0 0.0
        %1062 = vmatpush.msra.mxu0 %v1016
        %1063 = vmatmul.f32.gmra.mxu0 %v1006
        %v1064 = vpop.f32.mrf.mxu0
        %v1065 = vadd.f32 0.0, %v1064
        %1066 = vmatmul.f32.gmra.mxu0 %v1008
        %v1067 = vpop.f32.mrf.mxu0
        %v1068 = vadd.f32 0.0, %v1067
        %1069 = vmatmul.f32.gmra.mxu0 %v1010
        %v1070 = vpop.f32.mrf.mxu0
        %v1071 = vadd.f32 0.0, %v1070
        %1072 = vmatmul.f32.gmra.mxu0 %v1012
        %v1073 = vpop.f32.mrf.mxu0
        %v1074 = vadd.f32 0.0, %v1073
        %1075 = vdwg.mxu0
        %v1076 = vmul.f32 %v985, %v1036
        %v1077 = vmul.f32 %v989, %v1065
        %v1078 = vmul.f32 %v986, %v1039
        %v1079 = vmul.f32 %v990, %v1068
        %v1080 = vmul.f32 %v987, %v1042
        %v1081 = vmul.f32 %v991, %v1071
        %v1082 = vmul.f32 %v988, %v1045
        %v1083 = vmul.f32 %v992, %v1074
        %v1084 = vadd.f32 %v960, %v1076
        %v1085 = vadd.f32 %v961, %v1077
        %v1086 = vadd.f32 %v962, %v1078
        %v1087 = vadd.f32 %v963, %v1079
        %v1088 = vadd.f32 %v964, %v1080
        %v1089 = vadd.f32 %v965, %v1081
        %v1090 = vadd.f32 %v966, %v1082
        %v1091 = vadd.f32 %v967, %v1083
        %1092 = vrot.lane.b32.xlu0 %v371, 113
        %v1093 = vpop.permute.xlu0 %1092
        %1094 = vrot.lane.b32.xlu0 %v373, 113
        %v1095 = vpop.permute.xlu0 %1094
        %1096 = vrot.lane.b32.xlu0 %v375, 113
        %v1097 = vpop.permute.xlu0 %1096
        %1098 = vrot.lane.b32.xlu0 %v377, 113
        %v1099 = vpop.permute.xlu0 %1098
        %1100 = vrot.lane.b32.xlu0 %v372, 113
        %v1101 = vpop.permute.xlu0 %1100
        %1102 = vrot.lane.b32.xlu0 %v374, 113
        %v1103 = vpop.permute.xlu0 %1102
        %1104 = vrot.lane.b32.xlu0 %v376, 113
        %v1105 = vpop.permute.xlu0 %1104
        %1106 = vrot.lane.b32.xlu0 %v378, 113
        %v1107 = vpop.permute.xlu0 %1106
        %vm1108 = vcmp.lt.s32.totalorder %v396, 113
        %v1109 = vsel %vm1108, %v1093, %v1101
        %v1110 = vsel %vm1108, %v1095, %v1103
        %v1111 = vsel %vm1108, %v1097, %v1105
        %v1112 = vsel %vm1108, %v1099, %v1107
        %v1113 = vsel %vm1108, %v1101, %v1093
        %v1114 = vsel %vm1108, %v1103, %v1095
        %v1115 = vsel %vm1108, %v1105, %v1097
        %v1116 = vsel %vm1108, %v1107, %v1099
        %s1117 = scalar_lea.vmem %s6, 6
        %v1118 = vld [vmem:[%s1117] ss:$8 sm:$0x3]
        %1119 = vrot.lane.b32.xlu0 %v406, 122
        %v1120 = vpop.permute.xlu0 %1119
        %1121 = vrot.lane.b32.xlu0 %v407, 122
        %v1122 = vpop.permute.xlu0 %1121
        %1123 = vrot.lane.b32.xlu0 %v408, 122
        %v1124 = vpop.permute.xlu0 %1123
        %1125 = vrot.lane.b32.xlu0 %v409, 122
        %v1126 = vpop.permute.xlu0 %1125
        %v1128 = vperm.slane %v1118, 0
        %v1129 = vperm.slane %v1118, 1
        %v1130 = vsel %vm414, %v1120, 0
        %v1132 = vsel %vm414, %v1122, 0
        %v1134 = vsel %vm414, %v1124, 0
        %v1136 = vsel %vm414, %v1126, 0
        %v1138 = vsel %vm298, %v1128, 0
        %v1140 = vsel %vm298, %v1129, 0
        %1142 = vmatpush.msra.mxu0 0.0
        %1143 = vmatpush.msra.mxu0 0.0
        %1144 = vmatpush.msra.mxu0 0.0
        %1145 = vmatpush.msra.mxu0 0.0
        %1146 = vmatpush.msra.mxu0 0.0
        %1147 = vmatpush.msra.mxu0 0.0
        %1148 = vmatpush.msra.mxu0 0.0
        %1149 = vmatpush.msra.mxu0 0.0
        %1150 = vmatpush.msra.mxu0 0.0
        %1151 = vmatpush.msra.mxu0 0.0
        %1152 = vmatpush.msra.mxu0 0.0
        %1153 = vmatpush.msra.mxu0 0.0
        %1154 = vmatpush.msra.mxu0 0.0
        %1155 = vmatpush.msra.mxu0 0.0
        %1156 = vmatpush.msra.mxu0 0.0
        %1157 = vmatpush.msra.mxu0 %v1138
        %1158 = vmatmul.f32.gmra.mxu0 %v1130
        %v1159 = vpop.f32.mrf.mxu0
        %v1160 = vadd.f32 0.0, %v1159
        %1161 = vmatmul.f32.gmra.mxu0 %v1132
        %v1162 = vpop.f32.mrf.mxu0
        %v1163 = vadd.f32 0.0, %v1162
        %1164 = vmatmul.f32.gmra.mxu0 %v1134
        %v1165 = vpop.f32.mrf.mxu0
        %v1166 = vadd.f32 0.0, %v1165
        %1167 = vmatmul.f32.gmra.mxu0 %v1136
        %v1168 = vpop.f32.mrf.mxu0
        %v1169 = vadd.f32 0.0, %v1168
        %1170 = vdwg.mxu0
        %1171 = vmatpush.msra.mxu0 0.0
        %1172 = vmatpush.msra.mxu0 0.0
        %1173 = vmatpush.msra.mxu0 0.0
        %1174 = vmatpush.msra.mxu0 0.0
        %1175 = vmatpush.msra.mxu0 0.0
        %1176 = vmatpush.msra.mxu0 0.0
        %1177 = vmatpush.msra.mxu0 0.0
        %1178 = vmatpush.msra.mxu0 0.0
        %1179 = vmatpush.msra.mxu0 0.0
        %1180 = vmatpush.msra.mxu0 0.0
        %1181 = vmatpush.msra.mxu0 0.0
        %1182 = vmatpush.msra.mxu0 0.0
        %1183 = vmatpush.msra.mxu0 0.0
        %1184 = vmatpush.msra.mxu0 0.0
        %1185 = vmatpush.msra.mxu0 0.0
        %1186 = vmatpush.msra.mxu0 %v1140
        %1187 = vmatmul.f32.gmra.mxu0 %v1130
        %v1188 = vpop.f32.mrf.mxu0
        %v1189 = vadd.f32 0.0, %v1188
        %1190 = vmatmul.f32.gmra.mxu0 %v1132
        %v1191 = vpop.f32.mrf.mxu0
        %v1192 = vadd.f32 0.0, %v1191
        %1193 = vmatmul.f32.gmra.mxu0 %v1134
        %v1194 = vpop.f32.mrf.mxu0
        %v1195 = vadd.f32 0.0, %v1194
        %1196 = vmatmul.f32.gmra.mxu0 %v1136
        %v1197 = vpop.f32.mrf.mxu0
        %v1198 = vadd.f32 0.0, %v1197
        %1199 = vdwg.mxu0
        %v1200 = vmul.f32 %v1109, %v1160
        %v1201 = vmul.f32 %v1113, %v1189
        %v1202 = vmul.f32 %v1110, %v1163
        %v1203 = vmul.f32 %v1114, %v1192
        %v1204 = vmul.f32 %v1111, %v1166
        %v1205 = vmul.f32 %v1115, %v1195
        %v1206 = vmul.f32 %v1112, %v1169
        %v1207 = vmul.f32 %v1116, %v1198
        %v1208 = vadd.f32 %v1084, %v1200
        %v1209 = vadd.f32 %v1085, %v1201
        %v1210 = vadd.f32 %v1086, %v1202
        %v1211 = vadd.f32 %v1087, %v1203
        %v1212 = vadd.f32 %v1088, %v1204
        %v1213 = vadd.f32 %v1089, %v1205
        %v1214 = vadd.f32 %v1090, %v1206
        %v1215 = vadd.f32 %v1091, %v1207
        %1216 = vrot.lane.b32.xlu0 %v371, 112
        %v1217 = vpop.permute.xlu0 %1216
        %1218 = vrot.lane.b32.xlu0 %v373, 112
        %v1219 = vpop.permute.xlu0 %1218
        %1220 = vrot.lane.b32.xlu0 %v375, 112
        %v1221 = vpop.permute.xlu0 %1220
        %1222 = vrot.lane.b32.xlu0 %v377, 112
        %v1223 = vpop.permute.xlu0 %1222
        %1224 = vrot.lane.b32.xlu0 %v372, 112
        %v1225 = vpop.permute.xlu0 %1224
        %1226 = vrot.lane.b32.xlu0 %v374, 112
        %v1227 = vpop.permute.xlu0 %1226
        %1228 = vrot.lane.b32.xlu0 %v376, 112
        %v1229 = vpop.permute.xlu0 %1228
        %1230 = vrot.lane.b32.xlu0 %v378, 112
        %v1231 = vpop.permute.xlu0 %1230
        %vm1232 = vcmp.lt.s32.totalorder %v396, 112
        %v1233 = vsel %vm1232, %v1217, %v1225
        %v1234 = vsel %vm1232, %v1219, %v1227
        %v1235 = vsel %vm1232, %v1221, %v1229
        %v1236 = vsel %vm1232, %v1223, %v1231
        %v1237 = vsel %vm1232, %v1225, %v1217
        %v1238 = vsel %vm1232, %v1227, %v1219
        %v1239 = vsel %vm1232, %v1229, %v1221
        %v1240 = vsel %vm1232, %v1231, %v1223
        %s1241 = scalar_lea.vmem %s6, 7
        %v1242 = vld [vmem:[%s1241] ss:$8 sm:$0x3]
        %1243 = vrot.lane.b32.xlu0 %v406, 121
        %v1244 = vpop.permute.xlu0 %1243
        %1245 = vrot.lane.b32.xlu0 %v407, 121
        %v1246 = vpop.permute.xlu0 %1245
        %1247 = vrot.lane.b32.xlu0 %v408, 121
        %v1248 = vpop.permute.xlu0 %1247
        %1249 = vrot.lane.b32.xlu0 %v409, 121
        %v1250 = vpop.permute.xlu0 %1249
        %v1252 = vperm.slane %v1242, 0
        %v1253 = vperm.slane %v1242, 1
        %v1254 = vsel %vm414, %v1244, 0
        %v1256 = vsel %vm414, %v1246, 0
        %v1258 = vsel %vm414, %v1248, 0
        %v1260 = vsel %vm414, %v1250, 0
        %v1262 = vsel %vm298, %v1252, 0
        %v1264 = vsel %vm298, %v1253, 0
        %1266 = vmatpush.msra.mxu0 0.0
        %1267 = vmatpush.msra.mxu0 0.0
        %1268 = vmatpush.msra.mxu0 0.0
        %1269 = vmatpush.msra.mxu0 0.0
        %1270 = vmatpush.msra.mxu0 0.0
        %1271 = vmatpush.msra.mxu0 0.0
        %1272 = vmatpush.msra.mxu0 0.0
        %1273 = vmatpush.msra.mxu0 0.0
        %1274 = vmatpush.msra.mxu0 0.0
        %1275 = vmatpush.msra.mxu0 0.0
        %1276 = vmatpush.msra.mxu0 0.0
        %1277 = vmatpush.msra.mxu0 0.0
        %1278 = vmatpush.msra.mxu0 0.0
        %1279 = vmatpush.msra.mxu0 0.0
        %1280 = vmatpush.msra.mxu0 0.0
        %1281 = vmatpush.msra.mxu0 %v1262
        %1282 = vmatmul.f32.gmra.mxu0 %v1254
        %v1283 = vpop.f32.mrf.mxu0
        %v1284 = vadd.f32 0.0, %v1283
        %1285 = vmatmul.f32.gmra.mxu0 %v1256
        %v1286 = vpop.f32.mrf.mxu0
        %v1287 = vadd.f32 0.0, %v1286
        %1288 = vmatmul.f32.gmra.mxu0 %v1258
        %v1289 = vpop.f32.mrf.mxu0
        %v1290 = vadd.f32 0.0, %v1289
        %1291 = vmatmul.f32.gmra.mxu0 %v1260
        %v1292 = vpop.f32.mrf.mxu0
        %v1293 = vadd.f32 0.0, %v1292
        %1294 = vdwg.mxu0
        %1295 = vmatpush.msra.mxu0 0.0
        %1296 = vmatpush.msra.mxu0 0.0
        %1297 = vmatpush.msra.mxu0 0.0
        %1298 = vmatpush.msra.mxu0 0.0
        %1299 = vmatpush.msra.mxu0 0.0
        %1300 = vmatpush.msra.mxu0 0.0
        %1301 = vmatpush.msra.mxu0 0.0
        %1302 = vmatpush.msra.mxu0 0.0
        %1303 = vmatpush.msra.mxu0 0.0
        %1304 = vmatpush.msra.mxu0 0.0
        %1305 = vmatpush.msra.mxu0 0.0
        %1306 = vmatpush.msra.mxu0 0.0
        %1307 = vmatpush.msra.mxu0 0.0
        %1308 = vmatpush.msra.mxu0 0.0
        %1309 = vmatpush.msra.mxu0 0.0
        %1310 = vmatpush.msra.mxu0 %v1264
        %1311 = vmatmul.f32.gmra.mxu0 %v1254
        %v1312 = vpop.f32.mrf.mxu0
        %v1313 = vadd.f32 0.0, %v1312
        %1314 = vmatmul.f32.gmra.mxu0 %v1256
        %v1315 = vpop.f32.mrf.mxu0
        %v1316 = vadd.f32 0.0, %v1315
        %1317 = vmatmul.f32.gmra.mxu0 %v1258
        %v1318 = vpop.f32.mrf.mxu0
        %v1319 = vadd.f32 0.0, %v1318
        %1320 = vmatmul.f32.gmra.mxu0 %v1260
        %v1321 = vpop.f32.mrf.mxu0
        %v1322 = vadd.f32 0.0, %v1321
        %1323 = vdwg.mxu0
        %v1324 = vmul.f32 %v1233, %v1284
        %v1325 = vmul.f32 %v1237, %v1313
        %v1326 = vmul.f32 %v1234, %v1287
        %v1327 = vmul.f32 %v1238, %v1316
        %v1328 = vmul.f32 %v1235, %v1290
        %v1329 = vmul.f32 %v1239, %v1319
        %v1330 = vmul.f32 %v1236, %v1293
        %v1331 = vmul.f32 %v1240, %v1322
        %v1332 = vadd.f32 %v1208, %v1324
        %v1333 = vadd.f32 %v1209, %v1325
        %v1334 = vadd.f32 %v1210, %v1326
        %v1335 = vadd.f32 %v1211, %v1327
        %v1336 = vadd.f32 %v1212, %v1328
        %v1337 = vadd.f32 %v1213, %v1329
        %v1338 = vadd.f32 %v1214, %v1330
        %v1339 = vadd.f32 %v1215, %v1331
        %1340 = vrot.lane.b32.xlu0 %v371, 111
        %v1341 = vpop.permute.xlu0 %1340
        %1342 = vrot.lane.b32.xlu0 %v373, 111
        %v1343 = vpop.permute.xlu0 %1342
        %1344 = vrot.lane.b32.xlu0 %v375, 111
        %v1345 = vpop.permute.xlu0 %1344
        %1346 = vrot.lane.b32.xlu0 %v377, 111
        %v1347 = vpop.permute.xlu0 %1346
        %1348 = vrot.lane.b32.xlu0 %v372, 111
        %v1349 = vpop.permute.xlu0 %1348
        %1350 = vrot.lane.b32.xlu0 %v374, 111
        %v1351 = vpop.permute.xlu0 %1350
        %1352 = vrot.lane.b32.xlu0 %v376, 111
        %v1353 = vpop.permute.xlu0 %1352
        %1354 = vrot.lane.b32.xlu0 %v378, 111
        %v1355 = vpop.permute.xlu0 %1354
        %vm1356 = vcmp.lt.s32.totalorder %v396, 111
        %v1357 = vsel %vm1356, %v1341, %v1349
        %v1358 = vsel %vm1356, %v1343, %v1351
        %v1359 = vsel %vm1356, %v1345, %v1353
        %v1360 = vsel %vm1356, %v1347, %v1355
        %v1361 = vsel %vm1356, %v1349, %v1341
        %v1362 = vsel %vm1356, %v1351, %v1343
        %v1363 = vsel %vm1356, %v1353, %v1345
        %v1364 = vsel %vm1356, %v1355, %v1347
        %s1365 = scalar_lea.vmem %s6, 16
        %v1366 = vld [vmem:[%s1365] ss:$8 sm:$0x3]
        %1367 = vrot.lane.b32.xlu0 %v406, 120
        %v1368 = vpop.permute.xlu0 %1367
        %1369 = vrot.lane.b32.xlu0 %v407, 120
        %v1370 = vpop.permute.xlu0 %1369
        %1371 = vrot.lane.b32.xlu0 %v408, 120
        %v1372 = vpop.permute.xlu0 %1371
        %1373 = vrot.lane.b32.xlu0 %v409, 120
        %v1374 = vpop.permute.xlu0 %1373
        %v1376 = vperm.slane %v1366, 0
        %v1377 = vperm.slane %v1366, 1
        %v1378 = vsel %vm414, %v1368, 0
        %v1380 = vsel %vm414, %v1370, 0
        %v1382 = vsel %vm414, %v1372, 0
        %v1384 = vsel %vm414, %v1374, 0
        %v1386 = vsel %vm298, %v1376, 0
        %v1388 = vsel %vm298, %v1377, 0
        %1390 = vmatpush.msra.mxu0 0.0
        %1391 = vmatpush.msra.mxu0 0.0
        %1392 = vmatpush.msra.mxu0 0.0
        %1393 = vmatpush.msra.mxu0 0.0
        %1394 = vmatpush.msra.mxu0 0.0
        %1395 = vmatpush.msra.mxu0 0.0
        %1396 = vmatpush.msra.mxu0 0.0
        %1397 = vmatpush.msra.mxu0 0.0
        %1398 = vmatpush.msra.mxu0 0.0
        %1399 = vmatpush.msra.mxu0 0.0
        %1400 = vmatpush.msra.mxu0 0.0
        %1401 = vmatpush.msra.mxu0 0.0
        %1402 = vmatpush.msra.mxu0 0.0
        %1403 = vmatpush.msra.mxu0 0.0
        %1404 = vmatpush.msra.mxu0 0.0
        %1405 = vmatpush.msra.mxu0 %v1386
        %1406 = vmatmul.f32.gmra.mxu0 %v1378
        %v1407 = vpop.f32.mrf.mxu0
        %v1408 = vadd.f32 0.0, %v1407
        %1409 = vmatmul.f32.gmra.mxu0 %v1380
        %v1410 = vpop.f32.mrf.mxu0
        %v1411 = vadd.f32 0.0, %v1410
        %1412 = vmatmul.f32.gmra.mxu0 %v1382
        %v1413 = vpop.f32.mrf.mxu0
        %v1414 = vadd.f32 0.0, %v1413
        %1415 = vmatmul.f32.gmra.mxu0 %v1384
        %v1416 = vpop.f32.mrf.mxu0
        %v1417 = vadd.f32 0.0, %v1416
        %1418 = vdwg.mxu0
        %1419 = vmatpush.msra.mxu0 0.0
        %1420 = vmatpush.msra.mxu0 0.0
        %1421 = vmatpush.msra.mxu0 0.0
        %1422 = vmatpush.msra.mxu0 0.0
        %1423 = vmatpush.msra.mxu0 0.0
        %1424 = vmatpush.msra.mxu0 0.0
        %1425 = vmatpush.msra.mxu0 0.0
        %1426 = vmatpush.msra.mxu0 0.0
        %1427 = vmatpush.msra.mxu0 0.0
        %1428 = vmatpush.msra.mxu0 0.0
        %1429 = vmatpush.msra.mxu0 0.0
        %1430 = vmatpush.msra.mxu0 0.0
        %1431 = vmatpush.msra.mxu0 0.0
        %1432 = vmatpush.msra.mxu0 0.0
        %1433 = vmatpush.msra.mxu0 0.0
        %1434 = vmatpush.msra.mxu0 %v1388
        %1435 = vmatmul.f32.gmra.mxu0 %v1378
        %v1436 = vpop.f32.mrf.mxu0
        %v1437 = vadd.f32 0.0, %v1436
        %1438 = vmatmul.f32.gmra.mxu0 %v1380
        %v1439 = vpop.f32.mrf.mxu0
        %v1440 = vadd.f32 0.0, %v1439
        %1441 = vmatmul.f32.gmra.mxu0 %v1382
        %v1442 = vpop.f32.mrf.mxu0
        %v1443 = vadd.f32 0.0, %v1442
        %1444 = vmatmul.f32.gmra.mxu0 %v1384
        %v1445 = vpop.f32.mrf.mxu0
        %v1446 = vadd.f32 0.0, %v1445
        %1447 = vdwg.mxu0
        %v1448 = vmul.f32 %v1357, %v1408
        %v1449 = vmul.f32 %v1361, %v1437
        %v1450 = vmul.f32 %v1358, %v1411
        %v1451 = vmul.f32 %v1362, %v1440
        %v1452 = vmul.f32 %v1359, %v1414
        %v1453 = vmul.f32 %v1363, %v1443
        %v1454 = vmul.f32 %v1360, %v1417
        %v1455 = vmul.f32 %v1364, %v1446
        %v1456 = vadd.f32 %v1332, %v1448
        %v1457 = vadd.f32 %v1333, %v1449
        %v1458 = vadd.f32 %v1334, %v1450
        %v1459 = vadd.f32 %v1335, %v1451
        %v1460 = vadd.f32 %v1336, %v1452
        %v1461 = vadd.f32 %v1337, %v1453
        %v1462 = vadd.f32 %v1338, %v1454
        %v1463 = vadd.f32 %v1339, %v1455
        %v1464 = vld [vmem:[%s3] sm:$0xff]
        %v1465 = vld [vmem:[%s3 + $0x8] sm:$0xff]
        %v1466 = vld [vmem:[%s3 + $0x10] sm:$0xff]
        %v1467 = vld [vmem:[%s3 + $0x18] sm:$0xff]
        %1469 = vset.pattern.permute.xlu0 0
        %1470 = vperm.xlu0 %1469, %v1464
        %v1471 = vpop.permute.xlu0 %1470
        %1474 = vset.pattern.permute.xlu0 0
        %1475 = vperm.xlu0 %1474, %v1465
        %v1476 = vpop.permute.xlu0 %1475
        %1479 = vset.pattern.permute.xlu0 0
        %1480 = vperm.xlu0 %1479, %v1466
        %v1481 = vpop.permute.xlu0 %1480
        %1484 = vset.pattern.permute.xlu0 0
        %1485 = vperm.xlu0 %1484, %v1467
        %v1486 = vpop.permute.xlu0 %1485
        %v1488 = vadd.f32 %v1456, %v1471
        %v1489 = vadd.f32 %v1457, %v1471
        %v1490 = vadd.f32 %v1458, %v1476
        %v1491 = vadd.f32 %v1459, %v1476
        %v1492 = vadd.f32 %v1460, %v1481
        %v1493 = vadd.f32 %v1461, %v1481
        %v1494 = vadd.f32 %v1462, %v1486
        %v1495 = vadd.f32 %v1463, %v1486
        %v1496 = vmax.f32 %v1488, 0.0
        %v1497 = vmax.f32 %v1489, 0.0
        %v1498 = vmax.f32 %v1490, 0.0
        %v1499 = vmax.f32 %v1491, 0.0
        %v1500 = vmax.f32 %v1492, 0.0
        %v1501 = vmax.f32 %v1493, 0.0
        %v1502 = vmax.f32 %v1494, 0.0
        %v1503 = vmax.f32 %v1495, 0.0
        %v1504 = vmin.f32 %v1496, 6.0
        %v1505 = vmin.f32 %v1497, 6.0
        %v1506 = vmin.f32 %v1498, 6.0
        %v1507 = vmin.f32 %v1499, 6.0
        %v1508 = vmin.f32 %v1500, 6.0
        %v1509 = vmin.f32 %v1501, 6.0
        %v1510 = vmin.f32 %v1502, 6.0
        %v1511 = vmin.f32 %v1503, 6.0
        %v1512 = vld [vmem:[%s4] sm:$0xff]
        %v1513 = vld [vmem:[%s5] sm:$0xff]
        %1515 = vset.pattern.permute.xlu0 0
        %1516 = vperm.xlu0 %1515, %v1513
        %v1517 = vpop.permute.xlu0 %1516
        %vm1519 = vcmask 261120
        %v1521 = vsel %vm1519, %v1512, 0
        %1523 = vmatpush.msra.mxu0 0.0
        %1524 = vmatpush.msra.mxu0 0.0
        %1525 = vmatpush.msra.mxu0 0.0
        %1526 = vmatpush.msra.mxu0 0.0
        %1527 = vmatpush.msra.mxu0 0.0
        %1528 = vmatpush.msra.mxu0 0.0
        %1529 = vmatpush.msra.mxu0 0.0
        %1530 = vmatpush.msra.mxu0 0.0
        %1531 = vmatpush.msra.mxu0 0.0
        %1532 = vmatpush.msra.mxu0 0.0
        %1533 = vmatpush.msra.mxu0 0.0
        %1534 = vmatpush.msra.mxu0 0.0
        %1535 = vmatpush.msra.mxu0 %v1510
        %1536 = vmatpush.msra.mxu0 %v1508
        %1537 = vmatpush.msra.mxu0 %v1506
        %1538 = vmatpush.msra.mxu0 %v1504
        %1539 = vmatmul.f32.gmra.mxu0 %v1521
        %v1540 = vpop.f32.mrf.mxu0
        %v1541 = vadd.f32 %v1517, %v1540
        %1542 = vdwg.mxu0
        %1543 = vmatpush.msra.mxu0 0.0
        %1544 = vmatpush.msra.mxu0 0.0
        %1545 = vmatpush.msra.mxu0 0.0
        %1546 = vmatpush.msra.mxu0 0.0
        %1547 = vmatpush.msra.mxu0 0.0
        %1548 = vmatpush.msra.mxu0 0.0
        %1549 = vmatpush.msra.mxu0 0.0
        %1550 = vmatpush.msra.mxu0 0.0
        %1551 = vmatpush.msra.mxu0 0.0
        %1552 = vmatpush.msra.mxu0 0.0
        %1553 = vmatpush.msra.mxu0 0.0
        %1554 = vmatpush.msra.mxu0 0.0
        %1555 = vmatpush.msra.mxu0 %v1511
        %1556 = vmatpush.msra.mxu0 %v1509
        %1557 = vmatpush.msra.mxu0 %v1507
        %1558 = vmatpush.msra.mxu0 %v1505
        %1559 = vmatmul.f32.gmra.mxu0 %v1521
        %v1560 = vpop.f32.mrf.mxu0
        %v1561 = vadd.f32 %v1517, %v1560
        %1562 = vdwg.mxu0
        %v1563 = vadd.f32 %v1541, %v277
        %v1564 = vadd.f32 %v1561, %v278
        %1565 = vst [vmem:[%s271] sm:$0xff] %v1563
        %1566 = vst [vmem:[%s271 + $0x8] sm:$0xff] %v1564
        %s1567 = sand.u32 %s181, 1
        %s1568 = scalar_lea.sflag [#allocation3], %s1567
        %s1569 = sand.u32 %s181, 1
        %s1570 = smul.addr %s1569, 16
        %s1571 = scalar_lea.vmem [#allocation2], %s1570
        // Predicated region
        $region49: #{tpu_custom_call.1} parent=47 // pred_check
          %p1572 = pneg %p191
        $region50: #{tpu_custom_call.1} parent=47 // pred_check_branch
          %1574 = sbr.rel (%p1572) target = $region52
        $region51: #{tpu_custom_call.1} parent=47 // pred_region
          %1576 = vsyncadd %s1568, 0
          %s1577 = smul.addr %s21, 2
          %s1578 = smul.addr %s1577, 8
          %s1579 = scalar_lea.hbm %s7, %s1578
          %s1581 = sshll.u32 %s1571, 4
          %s1582 = int_to_ptr.vmem [resolvable:$true] %s1581
          %s1583 = sshll.u32 %s1579, 4
          %s1584 = int_to_ptr.hbm [resolvable:$true] %s1583
          %1586 = dma.vmem_to_hbm [thread:$0]  %s1582, 256, %s1584, %s1568
        $region52: #{tpu_custom_call.1} parent=47 // pred_fallthru
          _
      $region48: #{tpu_custom_call.1} parent=5 // pred_fallthru
        _
      %p1587 = scmp.le.s32.totalorder 2, %s16
      // Predicated region
      $region53: #{tpu_custom_call.1} parent=5 // pred_check
        %p1588 = pneg %p1587
      $region54: #{tpu_custom_call.1} parent=5 // pred_check_branch
        %1590 = sbr.rel (%p1588) target = $region56
      $region55: #{tpu_custom_call.1} parent=5 // pred_region
        %s1591 = ssub.s32 %s16, 2
        // Predicated region
        $region57: #{tpu_custom_call.1} parent=55 // pred_check
          %p1592 = pneg %p197
        $region58: #{tpu_custom_call.1} parent=55 // pred_check_branch
          %1594 = sbr.rel (%p1592) target = $region60
        $region59: #{tpu_custom_call.1} parent=55 // pred_region
          %s1595 = sand.u32 %s182, 1
          %s1596 = scalar_lea.sflag [#allocation3], %s1595
          %s1597 = sand.u32 %s182, 1
          %s1598 = smul.addr %s1597, 16
          %s1599 = scalar_lea.vmem [#allocation2], %s1598
          %1601 = dma.done %s1596, 256
        $region60: #{tpu_custom_call.1} parent=55 // pred_fallthru
          _
      $region56: #{tpu_custom_call.1} parent=5 // pred_fallthru
        _
    $region6: #{tpu_custom_call.1} parent=1 // loop_footer
      %s20 = sadd.s32 1, %s16
    $region7: #{tpu_custom_call.1} parent=1 // loop_footer_branch
      %15 = sbr.rel target = $region3
    $region8: #{tpu_custom_call.1} parent=1 // loop_exit
      _
    %1602 = vsyncpa [#allocation3], 1
    %s1603 = scalar_lea.sflag [#allocation3], 1
    %1604 = vsyncpa %s1603, 1

</llo_original>
